<compile_context>
chip_gen: v7x
topology: tpu7x:2x2x1
jax: 0.10.0
libtpu: 0.0.40
codegen_flags: <defaults>
</compile_context>

<pallas_src>
import functools

import jax
import jax.numpy as jnp
from jax.experimental import pallas as pl
from jax.experimental.pallas import tpu as pltpu


def _round_up(a: int, b: int) -> int:
    return ((a + b - 1) // b) * b


def _gcn_fused_kernel(adj_ref, x_ref, w1_ref, w2_ref, out_ref, h_ref, s2_ref, *, tm):
    layer = pl.program_id(0)   # 0: h_i = relu((adj_i @ x) @ W1) ; 1: out_i = adj_i @ (h @ W2)
    i = pl.program_id(1)       # adj row-tile index

    @pl.when(layer == 0)
    def _layer1():
        # Contract adj against the narrow input-feature side first: (adj_i @ x) @ W1.
        ax = jnp.dot(adj_ref[...], x_ref[...], preferred_element_type=jnp.float32)
        h = jnp.dot(ax, w1_ref[...], preferred_element_type=jnp.float32)
        row = pl.multiple_of(i * tm, tm)
        h_ref[pl.ds(row, tm), :] = jnp.maximum(h, 0.0)

    @pl.when(layer == 1)
    def _layer2():
        @pl.when(i == 0)
        def _compute_s2():
            # s2 = h @ W2 computed once (OUT <= HID, so keep adj @ (h @ W2)).
            s2_ref[...] = jnp.dot(h_ref[...], w2_ref[...],
                                  preferred_element_type=jnp.float32)

        out_ref[...] = jnp.dot(adj_ref[...], s2_ref[...],
                               preferred_element_type=jnp.float32).astype(out_ref.dtype)


def gcn_forward(x, adj, w1, w2):
    """GCN.forward (inference): adj @ relu(adj @ x @ W1) @ W2."""
    n, f_in = x.shape
    hid = w1.shape[1]
    f_out = w2.shape[1]

    # --- lane-dense zero padding (feature dims -> multiples of 128) ----------
    f_in_p = _round_up(f_in, 128)
    hid_p = _round_up(hid, 128)
    f_out_p = _round_up(f_out, 128)

    # --- adj row tiling -------------------------------------------------------
    # TODO(synk): the resident h (N_pad x HID_pad f32) scratch bounds N by VMEM;
    # stream h as well for graphs beyond ~50k nodes.
    n_128 = _round_up(n, 128)
    tm = 256 if n_128 > 256 else n_128
    n_pad = _round_up(n, tm)
    n_tiles = n_pad // tm

    f32 = jnp.float32
    x_p = jnp.pad(x.astype(f32), ((0, n_pad - n), (0, f_in_p - f_in)))
    adj_p = jnp.pad(adj.astype(f32), ((0, n_pad - n), (0, n_pad - n)))
    w1_p = jnp.pad(w1.astype(f32), ((0, f_in_p - f_in), (0, hid_p - hid)))
    w2_p = jnp.pad(w2.astype(f32), ((0, hid_p - hid), (0, f_out_p - f_out)))

    kernel = functools.partial(_gcn_fused_kernel, tm=tm)

    out_p = pl.pallas_call(
        kernel,
        out_shape=jax.ShapeDtypeStruct((n_pad, f_out_p), f32),
        grid_spec=pltpu.PrefetchScalarGridSpec(
            num_scalar_prefetch=0,
            grid=(2, n_tiles),
            in_specs=[
                # adj row tile streamed per grid step
                pl.BlockSpec((tm, n_pad), lambda l, i: (i, 0)),
                # x / W1 / W2 resident for the whole grid
                pl.BlockSpec((n_pad, f_in_p), lambda l, i: (0, 0)),
                pl.BlockSpec((f_in_p, hid_p), lambda l, i: (0, 0)),
                pl.BlockSpec((hid_p, f_out_p), lambda l, i: (0, 0)),
            ],
            # Only phase 1 writes output; phase-0 steps map to block 0 so no
            # unwritten block is flushed before phase 1 fills it.
            out_specs=pl.BlockSpec((tm, f_out_p), lambda l, i: (i * l, 0)),
            scratch_shapes=[
                pltpu.VMEM((n_pad, hid_p), f32),     # h = relu((adj @ x) @ W1)
                pltpu.VMEM((n_pad, f_out_p), f32),   # s2 = h @ W2
            ],
        ),
        compiler_params=pltpu.CompilerParams(
            # Phase 1 needs all of h -> tile axis cannot be megacore-parallel.
            dimension_semantics=("arbitrary", "arbitrary"),
        ),
    )(adj_p, x_p, w1_p, w2_p)

    return out_p[:n, :f_out]


def init_gcn_params(key, in_dim, hid_dim, out_dim):
    """Deterministic init matching GraphConvolution.reset_parameters (uniform +-stdv)."""
    k1, k2 = jax.random.split(key)
    stdv1 = 1.0 / jnp.sqrt(jnp.float32(hid_dim))
    stdv2 = 1.0 / jnp.sqrt(jnp.float32(out_dim))
    w1 = jax.random.uniform(k1, (in_dim, hid_dim), jnp.float32, -stdv1, stdv1)
    w2 = jax.random.uniform(k2, (hid_dim, out_dim), jnp.float32, -stdv2, stdv2)
    # bias params exist in the module but are never used in forward -> omitted.
    return w1, w2


if __name__ == "__main__":
    key = jax.random.PRNGKey(0)
    k_x, k_adj, k_p = jax.random.split(key, 3)

    # Small but multi-tile: N=300 -> N_pad=512, tm=256, 2 adj row tiles.
    N, IN_DIM, HID_DIM, OUT_DIM = 300, 8, 32, 4

    x = jax.random.normal(k_x, (N, IN_DIM), jnp.float32)
    # symmetric, row-normalized dense adjacency with self-loops
    a = jax.random.uniform(k_adj, (N, N), jnp.float32)
    a = (a + a.T) * 0.5 + jnp.eye(N, dtype=jnp.float32)
    adj = a / jnp.sum(a, axis=1, keepdims=True)

    w1, w2 = init_gcn_params(k_p, IN_DIM, HID_DIM, OUT_DIM)

    out = jax.jit(gcn_forward)(x, adj, w1, w2)
    jax.block_until_ready(out)

    # reference check against plain JAX (highest precision)
    hp = jax.lax.Precision.HIGHEST
    h_ref = jnp.maximum(jnp.dot(adj, jnp.dot(x, w1, precision=hp), precision=hp), 0.0)
    ref = jnp.dot(adj, jnp.dot(h_ref, w2, precision=hp), precision=hp)

    assert out.shape == (N, OUT_DIM)
    assert jnp.allclose(out, ref, atol=1e-4, rtol=1e-4), float(jnp.max(jnp.abs(out - ref)))

    print("KERNEL_OK")
</pallas_src>

<mosaic_0001>
module attributes {stable_mosaic.version = 11 : i64} {
  func.func @_gcn_fused_kernel(%arg0: i32, %arg1: i32, %arg2: memref<256x512xf32, #tpu.memory_space<vmem>>, %arg3: memref<512x128xf32, #tpu.memory_space<vmem>>, %arg4: memref<128x128xf32, #tpu.memory_space<vmem>>, %arg5: memref<128x128xf32, #tpu.memory_space<vmem>>, %arg6: memref<256x128xf32, #tpu.memory_space<vmem>>, %arg7: memref<512x128xf32, #tpu.memory_space<vmem>>, %arg8: memref<512x128xf32, #tpu.memory_space<vmem>>) attributes {dimension_semantics = [#tpu.dimension_semantics<arbitrary>, #tpu.dimension_semantics<arbitrary>], iteration_bounds = array<i64: 2, 2>, scalar_prefetch = 0 : i64, scratch_operands = 2 : i64, tpu.core_type = #tpu.core_type<tc>, window_params = [{transform_indices = @transform_0, window_bounds = array<i64: 256, 512>}, {pipeline_mode = #tpu.pipeline_mode<synchronous>, transform_indices = @transform_1, window_bounds = array<i64: 512, 128>}, {pipeline_mode = #tpu.pipeline_mode<synchronous>, transform_indices = @transform_2, window_bounds = array<i64: 128, 128>}, {pipeline_mode = #tpu.pipeline_mode<synchronous>, transform_indices = @transform_3, window_bounds = array<i64: 128, 128>}, {transform_indices = @transform_4, window_bounds = array<i64: 256, 128>}]} {
    %c0_i32 = arith.constant 0 : i32
    %0 = arith.cmpi eq, %arg0, %c0_i32 : i32
    %1 = arith.extui %0 : i1 to i32
    %c0_i32_0 = arith.constant 0 : i32
    %2 = arith.cmpi ne, %1, %c0_i32_0 : i32
    scf.if %2 {
      %c0 = arith.constant 0 : index
      %c0_2 = arith.constant 0 : index
      %6 = vector.load %arg2[%c0, %c0_2] : memref<256x512xf32, #tpu.memory_space<vmem>>, vector<256x512xf32>
      %c0_3 = arith.constant 0 : index
      %c0_4 = arith.constant 0 : index
      %7 = vector.load %arg3[%c0_3, %c0_4] : memref<512x128xf32, #tpu.memory_space<vmem>>, vector<512x128xf32>
      %cst = arith.constant dense<0.000000e+00> : vector<256x128xf32>
      %8 = tpu.matmul %6, %7, %cst {dimension_numbers = #tpu.dot_dimension_numbers<[1], [0], [0], [1], [0, 0, 1, 1], [], []>} : vector<256x512xf32>, vector<512x128xf32>, vector<256x128xf32> -> vector<256x128xf32>
      %c0_5 = arith.constant 0 : index
      %c0_6 = arith.constant 0 : index
      %9 = vector.load %arg4[%c0_5, %c0_6] : memref<128x128xf32, #tpu.memory_space<vmem>>, vector<128x128xf32>
      %cst_7 = arith.constant dense<0.000000e+00> : vector<256x128xf32>
      %10 = tpu.matmul %8, %9, %cst_7 {dimension_numbers = #tpu.dot_dimension_numbers<[1], [0], [0], [1], [0, 0, 1, 1], [], []>} : vector<256x128xf32>, vector<128x128xf32>, vector<256x128xf32> -> vector<256x128xf32>
      %c256_i32 = arith.constant 256 : i32
      %11 = arith.muli %arg1, %c256_i32 : i32
      %12 = tpu.assume_multiple %11, 256 : i32
      %cst_8 = arith.constant 0.000000e+00 : f32
      %13 = vector.broadcast %cst_8 : f32 to vector<256x128xf32>
      %14 = arith.maximumf %10, %13 : vector<256x128xf32>
      %15 = arith.index_cast %12 : i32 to index
      %c0_9 = arith.constant 0 : index
      %16 = vector.load %arg7[%15, %c0_9] : memref<512x128xf32, #tpu.memory_space<vmem>>, vector<256x128xf32>
      tpu.vector_store %arg7[%15, %c0_9], %14 {strides = array<i32>} : memref<512x128xf32, #tpu.memory_space<vmem>>, vector<256x128xf32>,
    } else {
    }
    %c1_i32 = arith.constant 1 : i32
    %3 = arith.cmpi eq, %arg0, %c1_i32 : i32
    %4 = arith.extui %3 : i1 to i32
    %c0_i32_1 = arith.constant 0 : i32
    %5 = arith.cmpi ne, %4, %c0_i32_1 : i32
    scf.if %5 {
      %c0_i32_2 = arith.constant 0 : i32
      %6 = arith.cmpi eq, %arg1, %c0_i32_2 : i32
      %7 = arith.extui %6 : i1 to i32
      %c0_i32_3 = arith.constant 0 : i32
      %8 = arith.cmpi ne, %7, %c0_i32_3 : i32
      scf.if %8 {
        %c0_9 = arith.constant 0 : index
        %c0_10 = arith.constant 0 : index
        %13 = vector.load %arg7[%c0_9, %c0_10] : memref<512x128xf32, #tpu.memory_space<vmem>>, vector<512x128xf32>
        %c0_11 = arith.constant 0 : index
        %c0_12 = arith.constant 0 : index
        %14 = vector.load %arg5[%c0_11, %c0_12] : memref<128x128xf32, #tpu.memory_space<vmem>>, vector<128x128xf32>
        %cst_13 = arith.constant dense<0.000000e+00> : vector<512x128xf32>
        %15 = tpu.matmul %13, %14, %cst_13 {dimension_numbers = #tpu.dot_dimension_numbers<[1], [0], [0], [1], [0, 0, 1, 1], [], []>} : vector<512x128xf32>, vector<128x128xf32>, vector<512x128xf32> -> vector<512x128xf32>
        %c0_14 = arith.constant 0 : index
        %c0_15 = arith.constant 0 : index
        %16 = vector.load %arg8[%c0_14, %c0_15] : memref<512x128xf32, #tpu.memory_space<vmem>>, vector<512x128xf32>
        tpu.vector_store %arg8[%c0_14, %c0_15], %15 {strides = array<i32>} : memref<512x128xf32, #tpu.memory_space<vmem>>, vector<512x128xf32>,
      } else {
      }
      %c0 = arith.constant 0 : index
      %c0_4 = arith.constant 0 : index
      %9 = vector.load %arg2[%c0, %c0_4] : memref<256x512xf32, #tpu.memory_space<vmem>>, vector<256x512xf32>
      %c0_5 = arith.constant 0 : index
      %c0_6 = arith.constant 0 : index
      %10 = vector.load %arg8[%c0_5, %c0_6] : memref<512x128xf32, #tpu.memory_space<vmem>>, vector<512x128xf32>
      %cst = arith.constant dense<0.000000e+00> : vector<256x128xf32>
      %11 = tpu.matmul %9, %10, %cst {dimension_numbers = #tpu.dot_dimension_numbers<[1], [0], [0], [1], [0, 0, 1, 1], [], []>} : vector<256x512xf32>, vector<512x128xf32>, vector<256x128xf32> -> vector<256x128xf32>
      %c0_7 = arith.constant 0 : index
      %c0_8 = arith.constant 0 : index
      %12 = vector.load %arg6[%c0_7, %c0_8] : memref<256x128xf32, #tpu.memory_space<vmem>>, vector<256x128xf32>
      tpu.vector_store %arg6[%c0_7, %c0_8], %11 {strides = array<i32>} : memref<256x128xf32, #tpu.memory_space<vmem>>, vector<256x128xf32>,
    } else {
    }
    return
  }
  func.func @transform_0(%arg0: i32, %arg1: i32) -> (i32, i32) {
    %c0_i32 = arith.constant 0 : i32
    %c0_i32_0 = arith.constant 0 : i32
    return %arg1, %c0_i32 : i32, i32
  }
  func.func @transform_1(%arg0: i32, %arg1: i32) -> (i32, i32) {
    %c0_i32 = arith.constant 0 : i32
    %c0_i32_0 = arith.constant 0 : i32
    %c0_i32_1 = arith.constant 0 : i32
    return %c0_i32, %c0_i32_0 : i32, i32
  }
  func.func @transform_2(%arg0: i32, %arg1: i32) -> (i32, i32) {
    %c0_i32 = arith.constant 0 : i32
    %c0_i32_0 = arith.constant 0 : i32
    %c0_i32_1 = arith.constant 0 : i32
    return %c0_i32, %c0_i32_0 : i32, i32
  }
  func.func @transform_3(%arg0: i32, %arg1: i32) -> (i32, i32) {
    %c0_i32 = arith.constant 0 : i32
    %c0_i32_0 = arith.constant 0 : i32
    %c0_i32_1 = arith.constant 0 : i32
    return %c0_i32, %c0_i32_0 : i32, i32
  }
  func.func @transform_4(%arg0: i32, %arg1: i32) -> (i32, i32) {
    %0 = arith.muli %arg1, %arg0 : i32
    %c0_i32 = arith.constant 0 : i32
    %c0_i32_0 = arith.constant 0 : i32
    return %0, %c0_i32 : i32, i32
  }
}

</mosaic_0001>

<llo_original>
// kernel: gcn_forward.1
$region0: #{gcn_forward.1}
  #allocation0 [shape = 'u32[]', space=smem, size = 0x4, offset = 0x4, fixed_abs, tag = 'smem constant byte address 0x4 - core index']
  #allocation1 [shape = 'u32[144,128]{1,0:T(1,128)}', space=vmem, size = 0x12000, scoped, tag = 'internal scratch']
  #allocation2 [shape = 'f32[512,128]{1,0:T(8,128)}', space=vmem, size = 0x40000, scoped, tag = 'scratch operand']
  #allocation3 [shape = 'f32[512,128]{1,0:T(8,128)}', space=vmem, size = 0x40000, scoped, tag = 'scratch operand']
  %s0 = inlined_call_operand.vmem [shape: f32[512,512], index: 0, kind: input, shape index: {}]
  %s1 = inlined_call_operand.vmem [shape: f32[512,128], index: 1, kind: input, shape index: {}]
  %s2 = inlined_call_operand.vmem [shape: f32[128,128], index: 2, kind: input, shape index: {}]
  %s3 = inlined_call_operand.vmem [shape: f32[128,128], index: 3, kind: input, shape index: {}]
  %s4 = inlined_call_operand.vmem [shape: f32[512,128], index: 4, kind: output, shape index: {}]
  %s5 = sld [smem:[#allocation0]]
  $region61: #{gcn_forward.1} parent=0
    _
  %s7 = ssub.s32 1, %s5
  %s8 = scalar_select 0, %s7, %s5
  loop: start=0, step=1, limit=6
  $region2: #{gcn_forward.1} parent=0 // loop_pre_header
    _
  $region3: #{gcn_forward.1} parent=0 // loop_header
    %s10 = sphi 0, %s14
    %p11 = scmp.ge.s32.totalorder %s10, 6
    %s17 = sphi 0, %s29
    %s18 = sphi 0, %s25
    %s19 = sphi 0, %s17
    %s20 = sphi 0, %s18
    %s21 = sphi 0, %s19
    %s22 = sphi 0, %s20
    %s32 = sphi 0, %s34
    %s35 = sphi 0, %s32
    %s36 = sphi 0, %s35
    %s52 = sphi 0, %s36
    %s56 = sphi 0, %s56
    %s58 = sphi 0, %s56
    %s59 = sphi 0, %s58
    %s73 = sphi 0, %s59
    %s77 = sphi 0, %s77
    %s79 = sphi 0, %s77
    %s80 = sphi 0, %s79
    %s94 = sphi 0, %s80
    %s98 = sphi 0, %s98
    %s100 = sphi 0, %s98
    %s101 = sphi 0, %s100
    %s115 = sphi 0, %s101
    %s123 = sphi 0, %s125
    %s126 = sphi 0, %s123
    %s127 = sphi 0, %s126
    %s143 = sphi 0, %s127
  $region4: #{gcn_forward.1} parent=0 // loop_header_branch
    %13 = sbr.rel (%p11) target = $region8
  $region5: #{gcn_forward.1} parent=0 // loop_body
    %s15 = ssub.s32 %s10, 1
    %s16 = ssub.s32 %s10, 2
    %s23 = sadd.s32 1, %s18
    %p24 = scmp.ge.s32.totalorder %s23, 2
    %s25 = scalar_select %p24, 0, %s23
    %s26 = sadd.s32 1, %s17
    %s27 = scalar_select %p24, %s26, %s17
    %p28 = scmp.ge.s32.totalorder %s27, 2
    %s29 = scalar_select %p28, 0, %s27
    %s30 = ssub.s32 %s18, %s25
    %p31 = scmp.eq.s32.totalorder %s30, 0
    %s33 = sadd.s32 %s32, 1
    %s34 = scalar_select %p31, %s32, %s33
    %p37 = pneg %p31
    %p38 = scmp.eq.s32.totalorder %s10, 3
    %p39 = por %p37, %p38
    %p40 = scmp.ne.s32.totalorder %s32, %s35
    %p41 = scmp.eq.s32.totalorder %s10, 0
    %p42 = por %p40, %p41
    %p43 = scmp.ne.s32.totalorder %s32, %s35
    %p44 = scmp.eq.s32.totalorder %s15, 3
    %p45 = por %p43, %p44
    %p46 = scmp.ne.s32.totalorder %s35, %s36
    %p47 = scmp.eq.s32.totalorder %s15, 0
    %p48 = por %p46, %p47
    %p49 = scmp.ne.s32.totalorder %s35, %s36
    %p50 = scmp.eq.s32.totalorder %s16, 3
    %p51 = por %p49, %p50
    %p53 = scmp.ne.s32.totalorder %s36, %s52
    %p54 = scmp.eq.s32.totalorder %s16, 0
    %p55 = por %p53, %p54
    %s57 = sadd.s32 %s56, 1
    %p60 = scmp.eq.s32.totalorder %s10, 3
    %p61 = scmp.ne.s32.totalorder %s56, %s58
    %p62 = scmp.eq.s32.totalorder %s10, 0
    %p63 = por %p61, %p62
    %p64 = scmp.ne.s32.totalorder %s56, %s58
    %p65 = scmp.eq.s32.totalorder %s15, 3
    %p66 = por %p64, %p65
    %p67 = scmp.ne.s32.totalorder %s58, %s59
    %p68 = scmp.eq.s32.totalorder %s15, 0
    %p69 = por %p67, %p68
    %p70 = scmp.ne.s32.totalorder %s58, %s59
    %p71 = scmp.eq.s32.totalorder %s16, 3
    %p72 = por %p70, %p71
    %p74 = scmp.ne.s32.totalorder %s59, %s73
    %p75 = scmp.eq.s32.totalorder %s16, 0
    %p76 = por %p74, %p75
    %s78 = sadd.s32 %s77, 1
    %p81 = scmp.eq.s32.totalorder %s10, 3
    %p82 = scmp.ne.s32.totalorder %s77, %s79
    %p83 = scmp.eq.s32.totalorder %s10, 0
    %p84 = por %p82, %p83
    %p85 = scmp.ne.s32.totalorder %s77, %s79
    %p86 = scmp.eq.s32.totalorder %s15, 3
    %p87 = por %p85, %p86
    %p88 = scmp.ne.s32.totalorder %s79, %s80
    %p89 = scmp.eq.s32.totalorder %s15, 0
    %p90 = por %p88, %p89
    %p91 = scmp.ne.s32.totalorder %s79, %s80
    %p92 = scmp.eq.s32.totalorder %s16, 3
    %p93 = por %p91, %p92
    %p95 = scmp.ne.s32.totalorder %s80, %s94
    %p96 = scmp.eq.s32.totalorder %s16, 0
    %p97 = por %p95, %p96
    %s99 = sadd.s32 %s98, 1
    %p102 = scmp.eq.s32.totalorder %s10, 3
    %p103 = scmp.ne.s32.totalorder %s98, %s100
    %p104 = scmp.eq.s32.totalorder %s10, 0
    %p105 = por %p103, %p104
    %p106 = scmp.ne.s32.totalorder %s98, %s100
    %p107 = scmp.eq.s32.totalorder %s15, 3
    %p108 = por %p106, %p107
    %p109 = scmp.ne.s32.totalorder %s100, %s101
    %p110 = scmp.eq.s32.totalorder %s15, 0
    %p111 = por %p109, %p110
    %p112 = scmp.ne.s32.totalorder %s100, %s101
    %p113 = scmp.eq.s32.totalorder %s16, 3
    %p114 = por %p112, %p113
    %p116 = scmp.ne.s32.totalorder %s101, %s115
    %p117 = scmp.eq.s32.totalorder %s16, 0
    %p118 = por %p116, %p117
    %s119 = smul.u32 %s18, %s17
    %s120 = smul.u32 %s25, %s29
    %s121 = ssub.s32 %s119, %s120
    %p122 = scmp.eq.s32.totalorder %s121, 0
    %s124 = sadd.s32 %s123, 1
    %s125 = scalar_select %p122, %s123, %s124
    %p128 = pneg %p122
    %p129 = scmp.eq.s32.totalorder %s10, 3
    %p130 = por %p128, %p129
    %p131 = scmp.ne.s32.totalorder %s123, %s126
    %p132 = scmp.eq.s32.totalorder %s10, 0
    %p133 = por %p131, %p132
    %p134 = scmp.ne.s32.totalorder %s123, %s126
    %p135 = scmp.eq.s32.totalorder %s15, 3
    %p136 = por %p134, %p135
    %p137 = scmp.ne.s32.totalorder %s126, %s127
    %p138 = scmp.eq.s32.totalorder %s15, 0
    %p139 = por %p137, %p138
    %p140 = scmp.ne.s32.totalorder %s126, %s127
    %p141 = scmp.eq.s32.totalorder %s16, 3
    %p142 = por %p140, %p141
    %p144 = scmp.ne.s32.totalorder %s127, %s143
    %p145 = scmp.eq.s32.totalorder %s16, 0
    %p146 = por %p144, %p145
    %p147 = scmp.le.s32.totalorder 1, %s10
    %p148 = scmp.lt.s32.totalorder %s10, 5
    %p149 = pnand %p147, %p148
    %p150 = pneg %p149
    // Predicated region
    $region9: #{gcn_forward.1} parent=5 // pred_check
      _
    $region10: #{gcn_forward.1} parent=5 // pred_check_branch
      %152 = sbr.rel (%p149) target = $region12
    $region11: #{gcn_forward.1} parent=5 // pred_region
      %s153 = ssub.s32 %s10, 1
      // Predicated region
      $region13: #{gcn_forward.1} parent=11 // pred_check
        %p154 = pneg %p69
      $region14: #{gcn_forward.1} parent=11 // pred_check_branch
        %156 = sbr.rel (%p154) target = $region16
      $region15: #{gcn_forward.1} parent=11 // pred_region
        _
      $region16: #{gcn_forward.1} parent=11 // pred_fallthru
        _
      // Predicated region
      $region17: #{gcn_forward.1} parent=11 // pred_check
        %p157 = pneg %p90
      $region18: #{gcn_forward.1} parent=11 // pred_check_branch
        %159 = sbr.rel (%p157) target = $region20
      $region19: #{gcn_forward.1} parent=11 // pred_region
        _
      $region20: #{gcn_forward.1} parent=11 // pred_fallthru
        _
      // Predicated region
      $region21: #{gcn_forward.1} parent=11 // pred_check
        %p160 = pneg %p111
      $region22: #{gcn_forward.1} parent=11 // pred_check_branch
        %162 = sbr.rel (%p160) target = $region24
      $region23: #{gcn_forward.1} parent=11 // pred_region
        _
      $region24: #{gcn_forward.1} parent=11 // pred_fallthru
        _
    $region12: #{gcn_forward.1} parent=5 // pred_fallthru
      _
    %p163 = scmp.lt.s32.totalorder %s10, 4
    // Predicated region
    $region25: #{gcn_forward.1} parent=5 // pred_check
      %p164 = pneg %p163
    $region26: #{gcn_forward.1} parent=5 // pred_check_branch
      %166 = sbr.rel (%p164) target = $region28
    $region27: #{gcn_forward.1} parent=5 // pred_region
      // Predicated region
      $region29: #{gcn_forward.1} parent=27 // pred_check
        %p167 = pneg %p42
      $region30: #{gcn_forward.1} parent=27 // pred_check_branch
        %169 = sbr.rel (%p167) target = $region32
      $region31: #{gcn_forward.1} parent=27 // pred_region
        %s170 = smul.u32 32, %s18
        %p171 = scmp.lt.s32.totalorder %s170, 63
        %s172 = scalar_select %p171, %s170, 63
        %s173 = smul.addr %s172, 4
        %s174 = smul.addr %s173, 8
        %s175 = scalar_lea.vmem %s0, %s174
        %s176 = smul.u32 32, %s18
      $region32: #{gcn_forward.1} parent=27 // pred_fallthru
        _
    $region28: #{gcn_forward.1} parent=5 // pred_fallthru
      _
    %p177 = scmp.le.s32.totalorder 1, %s10
    %p178 = scmp.lt.s32.totalorder %s10, 5
    %p179 = pnand %p177, %p178
    %p180 = pneg %p179
    // Predicated region
    $region33: #{gcn_forward.1} parent=5 // pred_check
      _
    $region34: #{gcn_forward.1} parent=5 // pred_check_branch
      %182 = sbr.rel (%p179) target = $region36
    $region35: #{gcn_forward.1} parent=5 // pred_region
      %s183 = ssub.s32 %s10, 1
      %s184 = smul.u32 32, %s20
      %p185 = scmp.lt.s32.totalorder %s184, 63
      %s186 = scalar_select %p185, %s184, 63
      %s187 = smul.addr %s186, 4
      %s188 = smul.addr %s187, 8
      %s189 = scalar_lea.vmem %s0, %s188
      %p190 = pneg %p48
      %p191 = pneg %p45
      %p192 = pneg %p69
      %p193 = pneg %p66
      %p194 = pneg %p90
      %p195 = pneg %p87
      %p196 = pneg %p111
      %p197 = pneg %p108
      %p198 = pneg %p139
      %p199 = pneg %p136
      %s200 = smul.u32 %s20, %s19
      %s201 = smul.u32 32, %s200
      %p202 = scmp.lt.s32.totalorder %s201, 63
      %s203 = scalar_select %p202, %s201, 63
      %s204 = smul.addr %s203, 8
      %s205 = scalar_lea.vmem %s4, %s204
      %s206 = smul.u32 32, %s20
      %p207 = scmp.lt.s32.totalorder %s206, 63
      %s208 = scalar_select %p207, %s206, 63
      %s209 = smul.addr %s208, 4
      %s210 = smul.addr %s209, 8
      %s211 = scalar_lea.vmem %s0, %s210
      %s212 = smul.u32 32, %s20
      %s213 = smul.u32 %s20, %s19
      %s214 = smul.u32 32, %s213
      %p215 = scmp.lt.s32.totalorder %s214, 63
      %s216 = scalar_select %p215, %s214, 63
      %s217 = smul.addr %s216, 8
      %s218 = scalar_lea.vmem %s4, %s217
      %s219 = smul.u32 %s20, %s19
      %s220 = smul.u32 32, %s219
      %p221 = scmp.eq.s32.totalorder %s19, 0
      // Predicated region
      $region37: #{gcn_forward.1} parent=35 // pred_check
        %p222 = pneg %p221
      $region38: #{gcn_forward.1} parent=35 // pred_check_branch
        %224 = sbr.rel (%p222) target = $region40
      $region39: #{gcn_forward.1} parent=35 // pred_region
        %v225 = vld [vmem:[%s211] sm:$0xff]
        %v226 = vld [vmem:[%s211 + $0x8] sm:$0xff]
        %v227 = vld [vmem:[%s211 + $0x10] sm:$0xff]
        %v228 = vld [vmem:[%s211 + $0x18] sm:$0xff]
        %v229 = vld [vmem:[%s211 + $0x20] sm:$0xff]
        %v230 = vld [vmem:[%s211 + $0x28] sm:$0xff]
        %v231 = vld [vmem:[%s211 + $0x30] sm:$0xff]
        %v232 = vld [vmem:[%s211 + $0x38] sm:$0xff]
        %v233 = vld [vmem:[%s211 + $0x40] sm:$0xff]
        %v234 = vld [vmem:[%s211 + $0x48] sm:$0xff]
        %v235 = vld [vmem:[%s211 + $0x50] sm:$0xff]
        %v236 = vld [vmem:[%s211 + $0x58] sm:$0xff]
        %v237 = vld [vmem:[%s211 + $0x60] sm:$0xff]
        %v238 = vld [vmem:[%s211 + $0x68] sm:$0xff]
        %v239 = vld [vmem:[%s211 + $0x70] sm:$0xff]
        %v240 = vld [vmem:[%s211 + $0x78] sm:$0xff]
        %v241 = vld [vmem:[%s211 + $0x80] sm:$0xff]
        %v242 = vld [vmem:[%s211 + $0x88] sm:$0xff]
        %v243 = vld [vmem:[%s211 + $0x90] sm:$0xff]
        %v244 = vld [vmem:[%s211 + $0x98] sm:$0xff]
        %v245 = vld [vmem:[%s211 + $0xa0] sm:$0xff]
        %v246 = vld [vmem:[%s211 + $0xa8] sm:$0xff]
        %v247 = vld [vmem:[%s211 + $0xb0] sm:$0xff]
        %v248 = vld [vmem:[%s211 + $0xb8] sm:$0xff]
        %v249 = vld [vmem:[%s211 + $0xc0] sm:$0xff]
        %v250 = vld [vmem:[%s211 + $0xc8] sm:$0xff]
        %v251 = vld [vmem:[%s211 + $0xd0] sm:$0xff]
        %v252 = vld [vmem:[%s211 + $0xd8] sm:$0xff]
        %v253 = vld [vmem:[%s211 + $0xe0] sm:$0xff]
        %v254 = vld [vmem:[%s211 + $0xe8] sm:$0xff]
        %v255 = vld [vmem:[%s211 + $0xf0] sm:$0xff]
        %v256 = vld [vmem:[%s211 + $0xf8] sm:$0xff]
        %v257 = vld [vmem:[%s211 + $0x100] sm:$0xff]
        %v258 = vld [vmem:[%s211 + $0x108] sm:$0xff]
        %v259 = vld [vmem:[%s211 + $0x110] sm:$0xff]
        %v260 = vld [vmem:[%s211 + $0x118] sm:$0xff]
        %v261 = vld [vmem:[%s211 + $0x120] sm:$0xff]
        %v262 = vld [vmem:[%s211 + $0x128] sm:$0xff]
        %v263 = vld [vmem:[%s211 + $0x130] sm:$0xff]
        %v264 = vld [vmem:[%s211 + $0x138] sm:$0xff]
        %v265 = vld [vmem:[%s211 + $0x140] sm:$0xff]
        %v266 = vld [vmem:[%s211 + $0x148] sm:$0xff]
        %v267 = vld [vmem:[%s211 + $0x150] sm:$0xff]
        %v268 = vld [vmem:[%s211 + $0x158] sm:$0xff]
        %v269 = vld [vmem:[%s211 + $0x160] sm:$0xff]
        %v270 = vld [vmem:[%s211 + $0x168] sm:$0xff]
        %v271 = vld [vmem:[%s211 + $0x170] sm:$0xff]
        %v272 = vld [vmem:[%s211 + $0x178] sm:$0xff]
        %v273 = vld [vmem:[%s211 + $0x180] sm:$0xff]
        %v274 = vld [vmem:[%s211 + $0x188] sm:$0xff]
        %v275 = vld [vmem:[%s211 + $0x190] sm:$0xff]
        %v276 = vld [vmem:[%s211 + $0x198] sm:$0xff]
        %v277 = vld [vmem:[%s211 + $0x1a0] sm:$0xff]
        %v278 = vld [vmem:[%s211 + $0x1a8] sm:$0xff]
        %v279 = vld [vmem:[%s211 + $0x1b0] sm:$0xff]
        %v280 = vld [vmem:[%s211 + $0x1b8] sm:$0xff]
        %v281 = vld [vmem:[%s211 + $0x1c0] sm:$0xff]
        %v282 = vld [vmem:[%s211 + $0x1c8] sm:$0xff]
        %v283 = vld [vmem:[%s211 + $0x1d0] sm:$0xff]
        %v284 = vld [vmem:[%s211 + $0x1d8] sm:$0xff]
        %v285 = vld [vmem:[%s211 + $0x1e0] sm:$0xff]
        %v286 = vld [vmem:[%s211 + $0x1e8] sm:$0xff]
        %v287 = vld [vmem:[%s211 + $0x1f0] sm:$0xff]
        %v288 = vld [vmem:[%s211 + $0x1f8] sm:$0xff]
        %v289 = vld [vmem:[%s211 + $0x200] sm:$0xff]
        %v290 = vld [vmem:[%s211 + $0x208] sm:$0xff]
        %v291 = vld [vmem:[%s211 + $0x210] sm:$0xff]
        %v292 = vld [vmem:[%s211 + $0x218] sm:$0xff]
        %v293 = vld [vmem:[%s211 + $0x220] sm:$0xff]
        %v294 = vld [vmem:[%s211 + $0x228] sm:$0xff]
        %v295 = vld [vmem:[%s211 + $0x230] sm:$0xff]
        %v296 = vld [vmem:[%s211 + $0x238] sm:$0xff]
        %v297 = vld [vmem:[%s211 + $0x240] sm:$0xff]
        %v298 = vld [vmem:[%s211 + $0x248] sm:$0xff]
        %v299 = vld [vmem:[%s211 + $0x250] sm:$0xff]
        %v300 = vld [vmem:[%s211 + $0x258] sm:$0xff]
        %v301 = vld [vmem:[%s211 + $0x260] sm:$0xff]
        %v302 = vld [vmem:[%s211 + $0x268] sm:$0xff]
        %v303 = vld [vmem:[%s211 + $0x270] sm:$0xff]
        %v304 = vld [vmem:[%s211 + $0x278] sm:$0xff]
        %v305 = vld [vmem:[%s211 + $0x280] sm:$0xff]
        %v306 = vld [vmem:[%s211 + $0x288] sm:$0xff]
        %v307 = vld [vmem:[%s211 + $0x290] sm:$0xff]
        %v308 = vld [vmem:[%s211 + $0x298] sm:$0xff]
        %v309 = vld [vmem:[%s211 + $0x2a0] sm:$0xff]
        %v310 = vld [vmem:[%s211 + $0x2a8] sm:$0xff]
        %v311 = vld [vmem:[%s211 + $0x2b0] sm:$0xff]
        %v312 = vld [vmem:[%s211 + $0x2b8] sm:$0xff]
        %v313 = vld [vmem:[%s211 + $0x2c0] sm:$0xff]
        %v314 = vld [vmem:[%s211 + $0x2c8] sm:$0xff]
        %v315 = vld [vmem:[%s211 + $0x2d0] sm:$0xff]
        %v316 = vld [vmem:[%s211 + $0x2d8] sm:$0xff]
        %v317 = vld [vmem:[%s211 + $0x2e0] sm:$0xff]
        %v318 = vld [vmem:[%s211 + $0x2e8] sm:$0xff]
        %v319 = vld [vmem:[%s211 + $0x2f0] sm:$0xff]
        %v320 = vld [vmem:[%s211 + $0x2f8] sm:$0xff]
        %v321 = vld [vmem:[%s211 + $0x300] sm:$0xff]
        %v322 = vld [vmem:[%s211 + $0x308] sm:$0xff]
        %v323 = vld [vmem:[%s211 + $0x310] sm:$0xff]
        %v324 = vld [vmem:[%s211 + $0x318] sm:$0xff]
        %v325 = vld [vmem:[%s211 + $0x320] sm:$0xff]
        %v326 = vld [vmem:[%s211 + $0x328] sm:$0xff]
        %v327 = vld [vmem:[%s211 + $0x330] sm:$0xff]
        %v328 = vld [vmem:[%s211 + $0x338] sm:$0xff]
        %v329 = vld [vmem:[%s211 + $0x340] sm:$0xff]
        %v330 = vld [vmem:[%s211 + $0x348] sm:$0xff]
        %v331 = vld [vmem:[%s211 + $0x350] sm:$0xff]
        %v332 = vld [vmem:[%s211 + $0x358] sm:$0xff]
        %v333 = vld [vmem:[%s211 + $0x360] sm:$0xff]
        %v334 = vld [vmem:[%s211 + $0x368] sm:$0xff]
        %v335 = vld [vmem:[%s211 + $0x370] sm:$0xff]
        %v336 = vld [vmem:[%s211 + $0x378] sm:$0xff]
        %v337 = vld [vmem:[%s211 + $0x380] sm:$0xff]
        %v338 = vld [vmem:[%s211 + $0x388] sm:$0xff]
        %v339 = vld [vmem:[%s211 + $0x390] sm:$0xff]
        %v340 = vld [vmem:[%s211 + $0x398] sm:$0xff]
        %v341 = vld [vmem:[%s211 + $0x3a0] sm:$0xff]
        %v342 = vld [vmem:[%s211 + $0x3a8] sm:$0xff]
        %v343 = vld [vmem:[%s211 + $0x3b0] sm:$0xff]
        %v344 = vld [vmem:[%s211 + $0x3b8] sm:$0xff]
        %v345 = vld [vmem:[%s211 + $0x3c0] sm:$0xff]
        %v346 = vld [vmem:[%s211 + $0x3c8] sm:$0xff]
        %v347 = vld [vmem:[%s211 + $0x3d0] sm:$0xff]
        %v348 = vld [vmem:[%s211 + $0x3d8] sm:$0xff]
        %v349 = vld [vmem:[%s211 + $0x3e0] sm:$0xff]
        %v350 = vld [vmem:[%s211 + $0x3e8] sm:$0xff]
        %v351 = vld [vmem:[%s211 + $0x3f0] sm:$0xff]
        %v352 = vld [vmem:[%s211 + $0x3f8] sm:$0xff]
        %v353 = vld [vmem:[%s1] sm:$0xff]
        %v354 = vld [vmem:[%s1 + $0x8] sm:$0xff]
        %v355 = vld [vmem:[%s1 + $0x10] sm:$0xff]
        %v356 = vld [vmem:[%s1 + $0x18] sm:$0xff]
        %v357 = vld [vmem:[%s1 + $0x20] sm:$0xff]
        %v358 = vld [vmem:[%s1 + $0x28] sm:$0xff]
        %v359 = vld [vmem:[%s1 + $0x30] sm:$0xff]
        %v360 = vld [vmem:[%s1 + $0x38] sm:$0xff]
        %v361 = vld [vmem:[%s1 + $0x40] sm:$0xff]
        %v362 = vld [vmem:[%s1 + $0x48] sm:$0xff]
        %v363 = vld [vmem:[%s1 + $0x50] sm:$0xff]
        %v364 = vld [vmem:[%s1 + $0x58] sm:$0xff]
        %v365 = vld [vmem:[%s1 + $0x60] sm:$0xff]
        %v366 = vld [vmem:[%s1 + $0x68] sm:$0xff]
        %v367 = vld [vmem:[%s1 + $0x70] sm:$0xff]
        %v368 = vld [vmem:[%s1 + $0x78] sm:$0xff]
        %v369 = vld [vmem:[%s1 + $0x80] sm:$0xff]
        %v370 = vld [vmem:[%s1 + $0x88] sm:$0xff]
        %v371 = vld [vmem:[%s1 + $0x90] sm:$0xff]
        %v372 = vld [vmem:[%s1 + $0x98] sm:$0xff]
        %v373 = vld [vmem:[%s1 + $0xa0] sm:$0xff]
        %v374 = vld [vmem:[%s1 + $0xa8] sm:$0xff]
        %v375 = vld [vmem:[%s1 + $0xb0] sm:$0xff]
        %v376 = vld [vmem:[%s1 + $0xb8] sm:$0xff]
        %v377 = vld [vmem:[%s1 + $0xc0] sm:$0xff]
        %v378 = vld [vmem:[%s1 + $0xc8] sm:$0xff]
        %v379 = vld [vmem:[%s1 + $0xd0] sm:$0xff]
        %v380 = vld [vmem:[%s1 + $0xd8] sm:$0xff]
        %v381 = vld [vmem:[%s1 + $0xe0] sm:$0xff]
        %v382 = vld [vmem:[%s1 + $0xe8] sm:$0xff]
        %v383 = vld [vmem:[%s1 + $0xf0] sm:$0xff]
        %v384 = vld [vmem:[%s1 + $0xf8] sm:$0xff]
        %v385 = vld [vmem:[%s1 + $0x100] sm:$0xff]
        %v386 = vld [vmem:[%s1 + $0x108] sm:$0xff]
        %v387 = vld [vmem:[%s1 + $0x110] sm:$0xff]
        %v388 = vld [vmem:[%s1 + $0x118] sm:$0xff]
        %v389 = vld [vmem:[%s1 + $0x120] sm:$0xff]
        %v390 = vld [vmem:[%s1 + $0x128] sm:$0xff]
        %v391 = vld [vmem:[%s1 + $0x130] sm:$0xff]
        %v392 = vld [vmem:[%s1 + $0x138] sm:$0xff]
        %v393 = vld [vmem:[%s1 + $0x140] sm:$0xff]
        %v394 = vld [vmem:[%s1 + $0x148] sm:$0xff]
        %v395 = vld [vmem:[%s1 + $0x150] sm:$0xff]
        %v396 = vld [vmem:[%s1 + $0x158] sm:$0xff]
        %v397 = vld [vmem:[%s1 + $0x160] sm:$0xff]
        %v398 = vld [vmem:[%s1 + $0x168] sm:$0xff]
        %v399 = vld [vmem:[%s1 + $0x170] sm:$0xff]
        %v400 = vld [vmem:[%s1 + $0x178] sm:$0xff]
        %v401 = vld [vmem:[%s1 + $0x180] sm:$0xff]
        %v402 = vld [vmem:[%s1 + $0x188] sm:$0xff]
        %v403 = vld [vmem:[%s1 + $0x190] sm:$0xff]
        %v404 = vld [vmem:[%s1 + $0x198] sm:$0xff]
        %v405 = vld [vmem:[%s1 + $0x1a0] sm:$0xff]
        %v406 = vld [vmem:[%s1 + $0x1a8] sm:$0xff]
        %v407 = vld [vmem:[%s1 + $0x1b0] sm:$0xff]
        %v408 = vld [vmem:[%s1 + $0x1b8] sm:$0xff]
        %v409 = vld [vmem:[%s1 + $0x1c0] sm:$0xff]
        %v410 = vld [vmem:[%s1 + $0x1c8] sm:$0xff]
        %v411 = vld [vmem:[%s1 + $0x1d0] sm:$0xff]
        %v412 = vld [vmem:[%s1 + $0x1d8] sm:$0xff]
        %v413 = vld [vmem:[%s1 + $0x1e0] sm:$0xff]
        %v414 = vld [vmem:[%s1 + $0x1e8] sm:$0xff]
        %v415 = vld [vmem:[%s1 + $0x1f0] sm:$0xff]
        %v416 = vld [vmem:[%s1 + $0x1f8] sm:$0xff]
        %417 = vmatprep.subr.mxu0 0.0
        %418 = vmatpush1.msra.mxu0 %v353
        %419 = vmatprep.subr.mxu0 0.0
        %420 = vmatpush1.msra.mxu0 %v354
        %421 = vmatprep.subr.mxu0 0.0
        %422 = vmatpush1.msra.mxu0 %v355
        %423 = vmatprep.subr.mxu0 0.0
        %424 = vmatpush1.msra.mxu0 %v356
        %425 = vmatprep.subr.mxu0 0.0
        %426 = vmatpush1.msra.mxu0 %v357
        %427 = vmatprep.subr.mxu0 0.0
        %428 = vmatpush1.msra.mxu0 %v358
        %429 = vmatprep.subr.mxu0 0.0
        %430 = vmatpush1.msra.mxu0 %v359
        %431 = vmatprep.subr.mxu0 0.0
        %432 = vmatpush1.msra.mxu0 %v360
        %433 = vmatprep.subr.mxu0 0.0
        %434 = vmatpush1.msra.mxu0 %v361
        %435 = vmatprep.subr.mxu0 0.0
        %436 = vmatpush1.msra.mxu0 %v362
        %437 = vmatprep.subr.mxu0 0.0
        %438 = vmatpush1.msra.mxu0 %v363
        %439 = vmatprep.subr.mxu0 0.0
        %440 = vmatpush1.msra.mxu0 %v364
        %441 = vmatprep.subr.mxu0 0.0
        %442 = vmatpush1.msra.mxu0 %v365
        %443 = vmatprep.subr.mxu0 0.0
        %444 = vmatpush1.msra.mxu0 %v366
        %445 = vmatprep.subr.mxu0 0.0
        %446 = vmatpush1.msra.mxu0 %v367
        %447 = vmatprep.subr.mxu0 0.0
        %448 = vmatpush1.msra.mxu0 %v368
        %449 = vmatprep.subr.mxu0 0.0
        %450 = vmatpush1.msra.mxu0 %v369
        %451 = vmatprep.subr.mxu0 0.0
        %452 = vmatpush1.msra.mxu0 %v370
        %453 = vmatprep.subr.mxu0 0.0
        %454 = vmatpush1.msra.mxu0 %v371
        %455 = vmatprep.subr.mxu0 0.0
        %456 = vmatpush1.msra.mxu0 %v372
        %457 = vmatprep.subr.mxu0 0.0
        %458 = vmatpush1.msra.mxu0 %v373
        %459 = vmatprep.subr.mxu0 0.0
        %460 = vmatpush1.msra.mxu0 %v374
        %461 = vmatprep.subr.mxu0 0.0
        %462 = vmatpush1.msra.mxu0 %v375
        %463 = vmatprep.subr.mxu0 0.0
        %464 = vmatpush1.msra.mxu0 %v376
        %465 = vmatprep.subr.mxu0 0.0
        %466 = vmatpush1.msra.mxu0 %v377
        %467 = vmatprep.subr.mxu0 0.0
        %468 = vmatpush1.msra.mxu0 %v378
        %469 = vmatprep.subr.mxu0 0.0
        %470 = vmatpush1.msra.mxu0 %v379
        %471 = vmatprep.subr.mxu0 0.0
        %472 = vmatpush1.msra.mxu0 %v380
        %473 = vmatprep.subr.mxu0 0.0
        %474 = vmatpush1.msra.mxu0 %v381
        %475 = vmatprep.subr.mxu0 0.0
        %476 = vmatpush1.msra.mxu0 %v382
        %477 = vmatprep.subr.mxu0 0.0
        %478 = vmatpush1.msra.mxu0 %v383
        %479 = vmatprep.subr.mxu0 0.0
        %480 = vmatpush1.msra.mxu0 %v384
        %481 = vmatprep.mubr.f32.mxu0 %v226
        %482 = vmatmul.mubr.f32.gmra.mrb[0].mxu0 %v225
        %v483 = vpop.f32.mrb[0].mxu0
        %v484 = vadd.f32 0.0, %v483
        %v485 = vpop.f32.mrb[0].mxu0
        %486 = vmatprep.mubr.f32.mxu0 %v230
        %487 = vmatmul.mubr.f32.gmra.mrb[0].mxu0 %v229
        %v488 = vpop.f32.mrb[0].mxu0
        %v489 = vadd.f32 0.0, %v488
        %v490 = vpop.f32.mrb[0].mxu0
        %491 = vmatprep.mubr.f32.mxu0 %v234
        %492 = vmatmul.mubr.f32.gmra.mrb[0].mxu0 %v233
        %v493 = vpop.f32.mrb[0].mxu0
        %v494 = vadd.f32 0.0, %v493
        %v495 = vpop.f32.mrb[0].mxu0
        %496 = vmatprep.mubr.f32.mxu0 %v238
        %497 = vmatmul.mubr.f32.gmra.mrb[0].mxu0 %v237
        %v498 = vpop.f32.mrb[0].mxu0
        %v499 = vadd.f32 0.0, %v498
        %v500 = vpop.f32.mrb[0].mxu0
        %501 = vmatprep.mubr.f32.mxu0 %v242
        %502 = vmatmul.mubr.f32.gmra.mrb[0].mxu0 %v241
        %v503 = vpop.f32.mrb[0].mxu0
        %v504 = vadd.f32 0.0, %v503
        %v505 = vpop.f32.mrb[0].mxu0
        %506 = vmatprep.mubr.f32.mxu0 %v246
        %507 = vmatmul.mubr.f32.gmra.mrb[0].mxu0 %v245
        %v508 = vpop.f32.mrb[0].mxu0
        %v509 = vadd.f32 0.0, %v508
        %v510 = vpop.f32.mrb[0].mxu0
        %511 = vmatprep.mubr.f32.mxu0 %v250
        %512 = vmatmul.mubr.f32.gmra.mrb[0].mxu0 %v249
        %v513 = vpop.f32.mrb[0].mxu0
        %v514 = vadd.f32 0.0, %v513
        %v515 = vpop.f32.mrb[0].mxu0
        %516 = vmatprep.mubr.f32.mxu0 %v254
        %517 = vmatmul.mubr.f32.gmra.mrb[0].mxu0 %v253
        %v518 = vpop.f32.mrb[0].mxu0
        %v519 = vadd.f32 0.0, %v518
        %v520 = vpop.f32.mrb[0].mxu0
        %521 = vmatprep.mubr.f32.mxu0 %v258
        %522 = vmatmul.mubr.f32.gmra.mrb[0].mxu0 %v257
        %v523 = vpop.f32.mrb[0].mxu0
        %v524 = vadd.f32 0.0, %v523
        %v525 = vpop.f32.mrb[0].mxu0
        %526 = vmatprep.mubr.f32.mxu0 %v262
        %527 = vmatmul.mubr.f32.gmra.mrb[0].mxu0 %v261
        %v528 = vpop.f32.mrb[0].mxu0
        %v529 = vadd.f32 0.0, %v528
        %v530 = vpop.f32.mrb[0].mxu0
        %531 = vmatprep.mubr.f32.mxu0 %v266
        %532 = vmatmul.mubr.f32.gmra.mrb[0].mxu0 %v265
        %v533 = vpop.f32.mrb[0].mxu0
        %v534 = vadd.f32 0.0, %v533
        %v535 = vpop.f32.mrb[0].mxu0
        %536 = vmatprep.mubr.f32.mxu0 %v270
        %537 = vmatmul.mubr.f32.gmra.mrb[0].mxu0 %v269
        %v538 = vpop.f32.mrb[0].mxu0
        %v539 = vadd.f32 0.0, %v538
        %v540 = vpop.f32.mrb[0].mxu0
        %541 = vmatprep.mubr.f32.mxu0 %v274
        %542 = vmatmul.mubr.f32.gmra.mrb[0].mxu0 %v273
        %v543 = vpop.f32.mrb[0].mxu0
        %v544 = vadd.f32 0.0, %v543
        %v545 = vpop.f32.mrb[0].mxu0
        %546 = vmatprep.mubr.f32.mxu0 %v278
        %547 = vmatmul.mubr.f32.gmra.mrb[0].mxu0 %v277
        %v548 = vpop.f32.mrb[0].mxu0
        %v549 = vadd.f32 0.0, %v548
        %v550 = vpop.f32.mrb[0].mxu0
        %551 = vmatprep.mubr.f32.mxu0 %v282
        %552 = vmatmul.mubr.f32.gmra.mrb[0].mxu0 %v281
        %v553 = vpop.f32.mrb[0].mxu0
        %v554 = vadd.f32 0.0, %v553
        %v555 = vpop.f32.mrb[0].mxu0
        %556 = vmatprep.mubr.f32.mxu0 %v286
        %557 = vmatmul.mubr.f32.gmra.mrb[0].mxu0 %v285
        %v558 = vpop.f32.mrb[0].mxu0
        %v559 = vadd.f32 0.0, %v558
        %v560 = vpop.f32.mrb[0].mxu0
        %561 = vmatprep.mubr.f32.mxu0 %v290
        %562 = vmatmul.mubr.f32.gmra.mrb[0].mxu0 %v289
        %v563 = vpop.f32.mrb[0].mxu0
        %v564 = vadd.f32 0.0, %v563
        %v565 = vpop.f32.mrb[0].mxu0
        %566 = vmatprep.mubr.f32.mxu0 %v294
        %567 = vmatmul.mubr.f32.gmra.mrb[0].mxu0 %v293
        %v568 = vpop.f32.mrb[0].mxu0
        %v569 = vadd.f32 0.0, %v568
        %v570 = vpop.f32.mrb[0].mxu0
        %571 = vmatprep.mubr.f32.mxu0 %v298
        %572 = vmatmul.mubr.f32.gmra.mrb[0].mxu0 %v297
        %v573 = vpop.f32.mrb[0].mxu0
        %v574 = vadd.f32 0.0, %v573
        %v575 = vpop.f32.mrb[0].mxu0
        %576 = vmatprep.mubr.f32.mxu0 %v302
        %577 = vmatmul.mubr.f32.gmra.mrb[0].mxu0 %v301
        %v578 = vpop.f32.mrb[0].mxu0
        %v579 = vadd.f32 0.0, %v578
        %v580 = vpop.f32.mrb[0].mxu0
        %581 = vmatprep.mubr.f32.mxu0 %v306
        %582 = vmatmul.mubr.f32.gmra.mrb[0].mxu0 %v305
        %v583 = vpop.f32.mrb[0].mxu0
        %v584 = vadd.f32 0.0, %v583
        %v585 = vpop.f32.mrb[0].mxu0
        %586 = vmatprep.mubr.f32.mxu0 %v310
        %587 = vmatmul.mubr.f32.gmra.mrb[0].mxu0 %v309
        %v588 = vpop.f32.mrb[0].mxu0
        %v589 = vadd.f32 0.0, %v588
        %v590 = vpop.f32.mrb[0].mxu0
        %591 = vmatprep.mubr.f32.mxu0 %v314
        %592 = vmatmul.mubr.f32.gmra.mrb[0].mxu0 %v313
        %v593 = vpop.f32.mrb[0].mxu0
        %v594 = vadd.f32 0.0, %v593
        %v595 = vpop.f32.mrb[0].mxu0
        %596 = vmatprep.mubr.f32.mxu0 %v318
        %597 = vmatmul.mubr.f32.gmra.mrb[0].mxu0 %v317
        %v598 = vpop.f32.mrb[0].mxu0
        %v599 = vadd.f32 0.0, %v598
        %v600 = vpop.f32.mrb[0].mxu0
        %601 = vmatprep.mubr.f32.mxu0 %v322
        %602 = vmatmul.mubr.f32.gmra.mrb[0].mxu0 %v321
        %v603 = vpop.f32.mrb[0].mxu0
        %v604 = vadd.f32 0.0, %v603
        %v605 = vpop.f32.mrb[0].mxu0
        %606 = vmatprep.mubr.f32.mxu0 %v326
        %607 = vmatmul.mubr.f32.gmra.mrb[0].mxu0 %v325
        %v608 = vpop.f32.mrb[0].mxu0
        %v609 = vadd.f32 0.0, %v608
        %v610 = vpop.f32.mrb[0].mxu0
        %611 = vmatprep.mubr.f32.mxu0 %v330
        %612 = vmatmul.mubr.f32.gmra.mrb[0].mxu0 %v329
        %v613 = vpop.f32.mrb[0].mxu0
        %v614 = vadd.f32 0.0, %v613
        %v615 = vpop.f32.mrb[0].mxu0
        %616 = vmatprep.mubr.f32.mxu0 %v334
        %617 = vmatmul.mubr.f32.gmra.mrb[0].mxu0 %v333
        %v618 = vpop.f32.mrb[0].mxu0
        %v619 = vadd.f32 0.0, %v618
        %v620 = vpop.f32.mrb[0].mxu0
        %621 = vmatprep.mubr.f32.mxu0 %v338
        %622 = vmatmul.mubr.f32.gmra.mrb[0].mxu0 %v337
        %v623 = vpop.f32.mrb[0].mxu0
        %v624 = vadd.f32 0.0, %v623
        %v625 = vpop.f32.mrb[0].mxu0
        %626 = vmatprep.mubr.f32.mxu0 %v342
        %627 = vmatmul.mubr.f32.gmra.mrb[0].mxu0 %v341
        %v628 = vpop.f32.mrb[0].mxu0
        %v629 = vadd.f32 0.0, %v628
        %v630 = vpop.f32.mrb[0].mxu0
        %631 = vmatprep.mubr.f32.mxu0 %v346
        %632 = vmatmul.mubr.f32.gmra.mrb[0].mxu0 %v345
        %v633 = vpop.f32.mrb[0].mxu0
        %v634 = vadd.f32 0.0, %v633
        %v635 = vpop.f32.mrb[0].mxu0
        %636 = vmatprep.mubr.f32.mxu0 %v350
        %637 = vmatmul.mubr.f32.gmra.mrb[0].mxu0 %v349
        %v638 = vpop.f32.mrb[0].mxu0
        %v639 = vadd.f32 0.0, %v638
        %v640 = vpop.f32.mrb[0].mxu0
        %641 = vdwg.mxu0
        %642 = vmatprep.subr.mxu0 0.0
        %643 = vmatpush1.msra.mxu0 %v385
        %644 = vmatprep.subr.mxu0 0.0
        %645 = vmatpush1.msra.mxu0 %v386
        %646 = vmatprep.subr.mxu0 0.0
        %647 = vmatpush1.msra.mxu0 %v387
        %648 = vmatprep.subr.mxu0 0.0
        %649 = vmatpush1.msra.mxu0 %v388
        %650 = vmatprep.subr.mxu0 0.0
        %651 = vmatpush1.msra.mxu0 %v389
        %652 = vmatprep.subr.mxu0 0.0
        %653 = vmatpush1.msra.mxu0 %v390
        %654 = vmatprep.subr.mxu0 0.0
        %655 = vmatpush1.msra.mxu0 %v391
        %656 = vmatprep.subr.mxu0 0.0
        %657 = vmatpush1.msra.mxu0 %v392
        %658 = vmatprep.subr.mxu0 0.0
        %659 = vmatpush1.msra.mxu0 %v393
        %660 = vmatprep.subr.mxu0 0.0
        %661 = vmatpush1.msra.mxu0 %v394
        %662 = vmatprep.subr.mxu0 0.0
        %663 = vmatpush1.msra.mxu0 %v395
        %664 = vmatprep.subr.mxu0 0.0
        %665 = vmatpush1.msra.mxu0 %v396
        %666 = vmatprep.subr.mxu0 0.0
        %667 = vmatpush1.msra.mxu0 %v397
        %668 = vmatprep.subr.mxu0 0.0
        %669 = vmatpush1.msra.mxu0 %v398
        %670 = vmatprep.subr.mxu0 0.0
        %671 = vmatpush1.msra.mxu0 %v399
        %672 = vmatprep.subr.mxu0 0.0
        %673 = vmatpush1.msra.mxu0 %v400
        %674 = vmatprep.subr.mxu0 0.0
        %675 = vmatpush1.msra.mxu0 %v401
        %676 = vmatprep.subr.mxu0 0.0
        %677 = vmatpush1.msra.mxu0 %v402
        %678 = vmatprep.subr.mxu0 0.0
        %679 = vmatpush1.msra.mxu0 %v403
        %680 = vmatprep.subr.mxu0 0.0
        %681 = vmatpush1.msra.mxu0 %v404
        %682 = vmatprep.subr.mxu0 0.0
        %683 = vmatpush1.msra.mxu0 %v405
        %684 = vmatprep.subr.mxu0 0.0
        %685 = vmatpush1.msra.mxu0 %v406
        %686 = vmatprep.subr.mxu0 0.0
        %687 = vmatpush1.msra.mxu0 %v407
        %688 = vmatprep.subr.mxu0 0.0
        %689 = vmatpush1.msra.mxu0 %v408
        %690 = vmatprep.subr.mxu0 0.0
        %691 = vmatpush1.msra.mxu0 %v409
        %692 = vmatprep.subr.mxu0 0.0
        %693 = vmatpush1.msra.mxu0 %v410
        %694 = vmatprep.subr.mxu0 0.0
        %695 = vmatpush1.msra.mxu0 %v411
        %696 = vmatprep.subr.mxu0 0.0
        %697 = vmatpush1.msra.mxu0 %v412
        %698 = vmatprep.subr.mxu0 0.0
        %699 = vmatpush1.msra.mxu0 %v413
        %700 = vmatprep.subr.mxu0 0.0
        %701 = vmatpush1.msra.mxu0 %v414
        %702 = vmatprep.subr.mxu0 0.0
        %703 = vmatpush1.msra.mxu0 %v415
        %704 = vmatprep.subr.mxu0 0.0
        %705 = vmatpush1.msra.mxu0 %v416
        %706 = vmatprep.mubr.f32.mxu0 %v228
        %707 = vmatmul.mubr.f32.gmra.mrb[0].mxu0 %v227
        %v708 = vpop.f32.mrb[0].mxu0
        %v709 = vadd.f32 %v484, %v708
        %v710 = vpop.f32.mrb[0].mxu0
        %711 = vmatprep.mubr.f32.mxu0 %v232
        %712 = vmatmul.mubr.f32.gmra.mrb[0].mxu0 %v231
        %v713 = vpop.f32.mrb[0].mxu0
        %v714 = vadd.f32 %v489, %v713
        %v715 = vpop.f32.mrb[0].mxu0
        %716 = vmatprep.mubr.f32.mxu0 %v236
        %717 = vmatmul.mubr.f32.gmra.mrb[0].mxu0 %v235
        %v718 = vpop.f32.mrb[0].mxu0
        %v719 = vadd.f32 %v494, %v718
        %v720 = vpop.f32.mrb[0].mxu0
        %721 = vmatprep.mubr.f32.mxu0 %v240
        %722 = vmatmul.mubr.f32.gmra.mrb[0].mxu0 %v239
        %v723 = vpop.f32.mrb[0].mxu0
        %v724 = vadd.f32 %v499, %v723
        %v725 = vpop.f32.mrb[0].mxu0
        %726 = vmatprep.mubr.f32.mxu0 %v244
        %727 = vmatmul.mubr.f32.gmra.mrb[0].mxu0 %v243
        %v728 = vpop.f32.mrb[0].mxu0
        %v729 = vadd.f32 %v504, %v728
        %v730 = vpop.f32.mrb[0].mxu0
        %731 = vmatprep.mubr.f32.mxu0 %v248
        %732 = vmatmul.mubr.f32.gmra.mrb[0].mxu0 %v247
        %v733 = vpop.f32.mrb[0].mxu0
        %v734 = vadd.f32 %v509, %v733
        %v735 = vpop.f32.mrb[0].mxu0
        %736 = vmatprep.mubr.f32.mxu0 %v252
        %737 = vmatmul.mubr.f32.gmra.mrb[0].mxu0 %v251
        %v738 = vpop.f32.mrb[0].mxu0
        %v739 = vadd.f32 %v514, %v738
        %v740 = vpop.f32.mrb[0].mxu0
        %741 = vmatprep.mubr.f32.mxu0 %v256
        %742 = vmatmul.mubr.f32.gmra.mrb[0].mxu0 %v255
        %v743 = vpop.f32.mrb[0].mxu0
        %v744 = vadd.f32 %v519, %v743
        %v745 = vpop.f32.mrb[0].mxu0
        %746 = vmatprep.mubr.f32.mxu0 %v260
        %747 = vmatmul.mubr.f32.gmra.mrb[0].mxu0 %v259
        %v748 = vpop.f32.mrb[0].mxu0
        %v749 = vadd.f32 %v524, %v748
        %v750 = vpop.f32.mrb[0].mxu0
        %751 = vmatprep.mubr.f32.mxu0 %v264
        %752 = vmatmul.mubr.f32.gmra.mrb[0].mxu0 %v263
        %v753 = vpop.f32.mrb[0].mxu0
        %v754 = vadd.f32 %v529, %v753
        %v755 = vpop.f32.mrb[0].mxu0
        %756 = vmatprep.mubr.f32.mxu0 %v268
        %757 = vmatmul.mubr.f32.gmra.mrb[0].mxu0 %v267
        %v758 = vpop.f32.mrb[0].mxu0
        %v759 = vadd.f32 %v534, %v758
        %v760 = vpop.f32.mrb[0].mxu0
        %761 = vmatprep.mubr.f32.mxu0 %v272
        %762 = vmatmul.mubr.f32.gmra.mrb[0].mxu0 %v271
        %v763 = vpop.f32.mrb[0].mxu0
        %v764 = vadd.f32 %v539, %v763
        %v765 = vpop.f32.mrb[0].mxu0
        %766 = vmatprep.mubr.f32.mxu0 %v276
        %767 = vmatmul.mubr.f32.gmra.mrb[0].mxu0 %v275
        %v768 = vpop.f32.mrb[0].mxu0
        %v769 = vadd.f32 %v544, %v768
        %v770 = vpop.f32.mrb[0].mxu0
        %771 = vmatprep.mubr.f32.mxu0 %v280
        %772 = vmatmul.mubr.f32.gmra.mrb[0].mxu0 %v279
        %v773 = vpop.f32.mrb[0].mxu0
        %v774 = vadd.f32 %v549, %v773
        %v775 = vpop.f32.mrb[0].mxu0
        %776 = vmatprep.mubr.f32.mxu0 %v284
        %777 = vmatmul.mubr.f32.gmra.mrb[0].mxu0 %v283
        %v778 = vpop.f32.mrb[0].mxu0
        %v779 = vadd.f32 %v554, %v778
        %v780 = vpop.f32.mrb[0].mxu0
        %781 = vmatprep.mubr.f32.mxu0 %v288
        %782 = vmatmul.mubr.f32.gmra.mrb[0].mxu0 %v287
        %v783 = vpop.f32.mrb[0].mxu0
        %v784 = vadd.f32 %v559, %v783
        %v785 = vpop.f32.mrb[0].mxu0
        %786 = vmatprep.mubr.f32.mxu0 %v292
        %787 = vmatmul.mubr.f32.gmra.mrb[0].mxu0 %v291
        %v788 = vpop.f32.mrb[0].mxu0
        %v789 = vadd.f32 %v564, %v788
        %v790 = vpop.f32.mrb[0].mxu0
        %791 = vmatprep.mubr.f32.mxu0 %v296
        %792 = vmatmul.mubr.f32.gmra.mrb[0].mxu0 %v295
        %v793 = vpop.f32.mrb[0].mxu0
        %v794 = vadd.f32 %v569, %v793
        %v795 = vpop.f32.mrb[0].mxu0
        %796 = vmatprep.mubr.f32.mxu0 %v300
        %797 = vmatmul.mubr.f32.gmra.mrb[0].mxu0 %v299
        %v798 = vpop.f32.mrb[0].mxu0
        %v799 = vadd.f32 %v574, %v798
        %v800 = vpop.f32.mrb[0].mxu0
        %801 = vmatprep.mubr.f32.mxu0 %v304
        %802 = vmatmul.mubr.f32.gmra.mrb[0].mxu0 %v303
        %v803 = vpop.f32.mrb[0].mxu0
        %v804 = vadd.f32 %v579, %v803
        %v805 = vpop.f32.mrb[0].mxu0
        %806 = vmatprep.mubr.f32.mxu0 %v308
        %807 = vmatmul.mubr.f32.gmra.mrb[0].mxu0 %v307
        %v808 = vpop.f32.mrb[0].mxu0
        %v809 = vadd.f32 %v584, %v808
        %v810 = vpop.f32.mrb[0].mxu0
        %811 = vmatprep.mubr.f32.mxu0 %v312
        %812 = vmatmul.mubr.f32.gmra.mrb[0].mxu0 %v311
        %v813 = vpop.f32.mrb[0].mxu0
        %v814 = vadd.f32 %v589, %v813
        %v815 = vpop.f32.mrb[0].mxu0
        %816 = vmatprep.mubr.f32.mxu0 %v316
        %817 = vmatmul.mubr.f32.gmra.mrb[0].mxu0 %v315
        %v818 = vpop.f32.mrb[0].mxu0
        %v819 = vadd.f32 %v594, %v818
        %v820 = vpop.f32.mrb[0].mxu0
        %821 = vmatprep.mubr.f32.mxu0 %v320
        %822 = vmatmul.mubr.f32.gmra.mrb[0].mxu0 %v319
        %v823 = vpop.f32.mrb[0].mxu0
        %v824 = vadd.f32 %v599, %v823
        %v825 = vpop.f32.mrb[0].mxu0
        %826 = vmatprep.mubr.f32.mxu0 %v324
        %827 = vmatmul.mubr.f32.gmra.mrb[0].mxu0 %v323
        %v828 = vpop.f32.mrb[0].mxu0
        %v829 = vadd.f32 %v604, %v828
        %v830 = vpop.f32.mrb[0].mxu0
        %831 = vmatprep.mubr.f32.mxu0 %v328
        %832 = vmatmul.mubr.f32.gmra.mrb[0].mxu0 %v327
        %v833 = vpop.f32.mrb[0].mxu0
        %v834 = vadd.f32 %v609, %v833
        %v835 = vpop.f32.mrb[0].mxu0
        %836 = vmatprep.mubr.f32.mxu0 %v332
        %837 = vmatmul.mubr.f32.gmra.mrb[0].mxu0 %v331
        %v838 = vpop.f32.mrb[0].mxu0
        %v839 = vadd.f32 %v614, %v838
        %v840 = vpop.f32.mrb[0].mxu0
        %841 = vmatprep.mubr.f32.mxu0 %v336
        %842 = vmatmul.mubr.f32.gmra.mrb[0].mxu0 %v335
        %v843 = vpop.f32.mrb[0].mxu0
        %v844 = vadd.f32 %v619, %v843
        %v845 = vpop.f32.mrb[0].mxu0
        %846 = vmatprep.mubr.f32.mxu0 %v340
        %847 = vmatmul.mubr.f32.gmra.mrb[0].mxu0 %v339
        %v848 = vpop.f32.mrb[0].mxu0
        %v849 = vadd.f32 %v624, %v848
        %v850 = vpop.f32.mrb[0].mxu0
        %851 = vmatprep.mubr.f32.mxu0 %v344
        %852 = vmatmul.mubr.f32.gmra.mrb[0].mxu0 %v343
        %v853 = vpop.f32.mrb[0].mxu0
        %v854 = vadd.f32 %v629, %v853
        %v855 = vpop.f32.mrb[0].mxu0
        %856 = vmatprep.mubr.f32.mxu0 %v348
        %857 = vmatmul.mubr.f32.gmra.mrb[0].mxu0 %v347
        %v858 = vpop.f32.mrb[0].mxu0
        %v859 = vadd.f32 %v634, %v858
        %v860 = vpop.f32.mrb[0].mxu0
        %861 = vmatprep.mubr.f32.mxu0 %v352
        %862 = vmatmul.mubr.f32.gmra.mrb[0].mxu0 %v351
        %v863 = vpop.f32.mrb[0].mxu0
        %v864 = vadd.f32 %v639, %v863
        %v865 = vpop.f32.mrb[0].mxu0
        %866 = vdwg.mxu0
        %v867 = vld [vmem:[%s2] sm:$0xff]
        %v868 = vld [vmem:[%s2 + $0x8] sm:$0xff]
        %v869 = vld [vmem:[%s2 + $0x10] sm:$0xff]
        %v870 = vld [vmem:[%s2 + $0x18] sm:$0xff]
        %v871 = vld [vmem:[%s2 + $0x20] sm:$0xff]
        %v872 = vld [vmem:[%s2 + $0x28] sm:$0xff]
        %v873 = vld [vmem:[%s2 + $0x30] sm:$0xff]
        %v874 = vld [vmem:[%s2 + $0x38] sm:$0xff]
        %v875 = vld [vmem:[%s2 + $0x40] sm:$0xff]
        %v876 = vld [vmem:[%s2 + $0x48] sm:$0xff]
        %v877 = vld [vmem:[%s2 + $0x50] sm:$0xff]
        %v878 = vld [vmem:[%s2 + $0x58] sm:$0xff]
        %v879 = vld [vmem:[%s2 + $0x60] sm:$0xff]
        %v880 = vld [vmem:[%s2 + $0x68] sm:$0xff]
        %v881 = vld [vmem:[%s2 + $0x70] sm:$0xff]
        %v882 = vld [vmem:[%s2 + $0x78] sm:$0xff]
        %883 = vmatprep.subr.mxu0 0.0
        %884 = vmatpush1.msra.mxu0 %v867
        %885 = vmatprep.subr.mxu0 0.0
        %886 = vmatpush1.msra.mxu0 %v868
        %887 = vmatprep.subr.mxu0 0.0
        %888 = vmatpush1.msra.mxu0 %v869
        %889 = vmatprep.subr.mxu0 0.0
        %890 = vmatpush1.msra.mxu0 %v870
        %891 = vmatprep.subr.mxu0 0.0
        %892 = vmatpush1.msra.mxu0 %v871
        %893 = vmatprep.subr.mxu0 0.0
        %894 = vmatpush1.msra.mxu0 %v872
        %895 = vmatprep.subr.mxu0 0.0
        %896 = vmatpush1.msra.mxu0 %v873
        %897 = vmatprep.subr.mxu0 0.0
        %898 = vmatpush1.msra.mxu0 %v874
        %899 = vmatprep.subr.mxu0 0.0
        %900 = vmatpush1.msra.mxu0 %v875
        %901 = vmatprep.subr.mxu0 0.0
        %902 = vmatpush1.msra.mxu0 %v876
        %903 = vmatprep.subr.mxu0 0.0
        %904 = vmatpush1.msra.mxu0 %v877
        %905 = vmatprep.subr.mxu0 0.0
        %906 = vmatpush1.msra.mxu0 %v878
        %907 = vmatprep.subr.mxu0 0.0
        %908 = vmatpush1.msra.mxu0 %v879
        %909 = vmatprep.subr.mxu0 0.0
        %910 = vmatpush1.msra.mxu0 %v880
        %911 = vmatprep.subr.mxu0 0.0
        %912 = vmatpush1.msra.mxu0 %v881
        %913 = vmatprep.subr.mxu0 0.0
        %914 = vmatpush1.msra.mxu0 %v882
        %915 = vmatprep.subr.mxu0 0.0
        %916 = vmatpush1.msra.mxu0 0.0
        %917 = vmatprep.subr.mxu0 0.0
        %918 = vmatpush1.msra.mxu0 0.0
        %919 = vmatprep.subr.mxu0 0.0
        %920 = vmatpush1.msra.mxu0 0.0
        %921 = vmatprep.subr.mxu0 0.0
        %922 = vmatpush1.msra.mxu0 0.0
        %923 = vmatprep.subr.mxu0 0.0
        %924 = vmatpush1.msra.mxu0 0.0
        %925 = vmatprep.subr.mxu0 0.0
        %926 = vmatpush1.msra.mxu0 0.0
        %927 = vmatprep.subr.mxu0 0.0
        %928 = vmatpush1.msra.mxu0 0.0
        %929 = vmatprep.subr.mxu0 0.0
        %930 = vmatpush1.msra.mxu0 0.0
        %931 = vmatprep.subr.mxu0 0.0
        %932 = vmatpush1.msra.mxu0 0.0
        %933 = vmatprep.subr.mxu0 0.0
        %934 = vmatpush1.msra.mxu0 0.0
        %935 = vmatprep.subr.mxu0 0.0
        %936 = vmatpush1.msra.mxu0 0.0
        %937 = vmatprep.subr.mxu0 0.0
        %938 = vmatpush1.msra.mxu0 0.0
        %939 = vmatprep.subr.mxu0 0.0
        %940 = vmatpush1.msra.mxu0 0.0
        %941 = vmatprep.subr.mxu0 0.0
        %942 = vmatpush1.msra.mxu0 0.0
        %943 = vmatprep.subr.mxu0 0.0
        %944 = vmatpush1.msra.mxu0 0.0
        %945 = vmatprep.subr.mxu0 0.0
        %946 = vmatpush1.msra.mxu0 0.0
        %947 = vmatprep.mubr.f32.mxu0 0.0
        %948 = vmatmul.mubr.f32.gmra.mrb[0].mxu0 %v709
        %v949 = vpop.f32.mrb[0].mxu0
        %v950 = vadd.f32 0.0, %v949
        %v951 = vpop.f32.mrb[0].mxu0
        %952 = vmatprep.mubr.f32.mxu0 0.0
        %953 = vmatmul.mubr.f32.gmra.mrb[0].mxu0 %v714
        %v954 = vpop.f32.mrb[0].mxu0
        %v955 = vadd.f32 0.0, %v954
        %v956 = vpop.f32.mrb[0].mxu0
        %957 = vmatprep.mubr.f32.mxu0 0.0
        %958 = vmatmul.mubr.f32.gmra.mrb[0].mxu0 %v719
        %v959 = vpop.f32.mrb[0].mxu0
        %v960 = vadd.f32 0.0, %v959
        %v961 = vpop.f32.mrb[0].mxu0
        %962 = vmatprep.mubr.f32.mxu0 0.0
        %963 = vmatmul.mubr.f32.gmra.mrb[0].mxu0 %v724
        %v964 = vpop.f32.mrb[0].mxu0
        %v965 = vadd.f32 0.0, %v964
        %v966 = vpop.f32.mrb[0].mxu0
        %967 = vmatprep.mubr.f32.mxu0 0.0
        %968 = vmatmul.mubr.f32.gmra.mrb[0].mxu0 %v729
        %v969 = vpop.f32.mrb[0].mxu0
        %v970 = vadd.f32 0.0, %v969
        %v971 = vpop.f32.mrb[0].mxu0
        %972 = vmatprep.mubr.f32.mxu0 0.0
        %973 = vmatmul.mubr.f32.gmra.mrb[0].mxu0 %v734
        %v974 = vpop.f32.mrb[0].mxu0
        %v975 = vadd.f32 0.0, %v974
        %v976 = vpop.f32.mrb[0].mxu0
        %977 = vmatprep.mubr.f32.mxu0 0.0
        %978 = vmatmul.mubr.f32.gmra.mrb[0].mxu0 %v739
        %v979 = vpop.f32.mrb[0].mxu0
        %v980 = vadd.f32 0.0, %v979
        %v981 = vpop.f32.mrb[0].mxu0
        %982 = vmatprep.mubr.f32.mxu0 0.0
        %983 = vmatmul.mubr.f32.gmra.mrb[0].mxu0 %v744
        %v984 = vpop.f32.mrb[0].mxu0
        %v985 = vadd.f32 0.0, %v984
        %v986 = vpop.f32.mrb[0].mxu0
        %987 = vmatprep.mubr.f32.mxu0 0.0
        %988 = vmatmul.mubr.f32.gmra.mrb[0].mxu0 %v749
        %v989 = vpop.f32.mrb[0].mxu0
        %v990 = vadd.f32 0.0, %v989
        %v991 = vpop.f32.mrb[0].mxu0
        %992 = vmatprep.mubr.f32.mxu0 0.0
        %993 = vmatmul.mubr.f32.gmra.mrb[0].mxu0 %v754
        %v994 = vpop.f32.mrb[0].mxu0
        %v995 = vadd.f32 0.0, %v994
        %v996 = vpop.f32.mrb[0].mxu0
        %997 = vmatprep.mubr.f32.mxu0 0.0
        %998 = vmatmul.mubr.f32.gmra.mrb[0].mxu0 %v759
        %v999 = vpop.f32.mrb[0].mxu0
        %v1000 = vadd.f32 0.0, %v999
        %v1001 = vpop.f32.mrb[0].mxu0
        %1002 = vmatprep.mubr.f32.mxu0 0.0
        %1003 = vmatmul.mubr.f32.gmra.mrb[0].mxu0 %v764
        %v1004 = vpop.f32.mrb[0].mxu0
        %v1005 = vadd.f32 0.0, %v1004
        %v1006 = vpop.f32.mrb[0].mxu0
        %1007 = vmatprep.mubr.f32.mxu0 0.0
        %1008 = vmatmul.mubr.f32.gmra.mrb[0].mxu0 %v769
        %v1009 = vpop.f32.mrb[0].mxu0
        %v1010 = vadd.f32 0.0, %v1009
        %v1011 = vpop.f32.mrb[0].mxu0
        %1012 = vmatprep.mubr.f32.mxu0 0.0
        %1013 = vmatmul.mubr.f32.gmra.mrb[0].mxu0 %v774
        %v1014 = vpop.f32.mrb[0].mxu0
        %v1015 = vadd.f32 0.0, %v1014
        %v1016 = vpop.f32.mrb[0].mxu0
        %1017 = vmatprep.mubr.f32.mxu0 0.0
        %1018 = vmatmul.mubr.f32.gmra.mrb[0].mxu0 %v779
        %v1019 = vpop.f32.mrb[0].mxu0
        %v1020 = vadd.f32 0.0, %v1019
        %v1021 = vpop.f32.mrb[0].mxu0
        %1022 = vmatprep.mubr.f32.mxu0 0.0
        %1023 = vmatmul.mubr.f32.gmra.mrb[0].mxu0 %v784
        %v1024 = vpop.f32.mrb[0].mxu0
        %v1025 = vadd.f32 0.0, %v1024
        %v1026 = vpop.f32.mrb[0].mxu0
        %1027 = vmatprep.mubr.f32.mxu0 0.0
        %1028 = vmatmul.mubr.f32.gmra.mrb[0].mxu0 %v789
        %v1029 = vpop.f32.mrb[0].mxu0
        %v1030 = vadd.f32 0.0, %v1029
        %v1031 = vpop.f32.mrb[0].mxu0
        %1032 = vmatprep.mubr.f32.mxu0 0.0
        %1033 = vmatmul.mubr.f32.gmra.mrb[0].mxu0 %v794
        %v1034 = vpop.f32.mrb[0].mxu0
        %v1035 = vadd.f32 0.0, %v1034
        %v1036 = vpop.f32.mrb[0].mxu0
        %1037 = vmatprep.mubr.f32.mxu0 0.0
        %1038 = vmatmul.mubr.f32.gmra.mrb[0].mxu0 %v799
        %v1039 = vpop.f32.mrb[0].mxu0
        %v1040 = vadd.f32 0.0, %v1039
        %v1041 = vpop.f32.mrb[0].mxu0
        %1042 = vmatprep.mubr.f32.mxu0 0.0
        %1043 = vmatmul.mubr.f32.gmra.mrb[0].mxu0 %v804
        %v1044 = vpop.f32.mrb[0].mxu0
        %v1045 = vadd.f32 0.0, %v1044
        %v1046 = vpop.f32.mrb[0].mxu0
        %1047 = vmatprep.mubr.f32.mxu0 0.0
        %1048 = vmatmul.mubr.f32.gmra.mrb[0].mxu0 %v809
        %v1049 = vpop.f32.mrb[0].mxu0
        %v1050 = vadd.f32 0.0, %v1049
        %v1051 = vpop.f32.mrb[0].mxu0
        %1052 = vmatprep.mubr.f32.mxu0 0.0
        %1053 = vmatmul.mubr.f32.gmra.mrb[0].mxu0 %v814
        %v1054 = vpop.f32.mrb[0].mxu0
        %v1055 = vadd.f32 0.0, %v1054
        %v1056 = vpop.f32.mrb[0].mxu0
        %1057 = vmatprep.mubr.f32.mxu0 0.0
        %1058 = vmatmul.mubr.f32.gmra.mrb[0].mxu0 %v819
        %v1059 = vpop.f32.mrb[0].mxu0
        %v1060 = vadd.f32 0.0, %v1059
        %v1061 = vpop.f32.mrb[0].mxu0
        %1062 = vmatprep.mubr.f32.mxu0 0.0
        %1063 = vmatmul.mubr.f32.gmra.mrb[0].mxu0 %v824
        %v1064 = vpop.f32.mrb[0].mxu0
        %v1065 = vadd.f32 0.0, %v1064
        %v1066 = vpop.f32.mrb[0].mxu0
        %1067 = vmatprep.mubr.f32.mxu0 0.0
        %1068 = vmatmul.mubr.f32.gmra.mrb[0].mxu0 %v829
        %v1069 = vpop.f32.mrb[0].mxu0
        %v1070 = vadd.f32 0.0, %v1069
        %v1071 = vpop.f32.mrb[0].mxu0
        %1072 = vmatprep.mubr.f32.mxu0 0.0
        %1073 = vmatmul.mubr.f32.gmra.mrb[0].mxu0 %v834
        %v1074 = vpop.f32.mrb[0].mxu0
        %v1075 = vadd.f32 0.0, %v1074
        %v1076 = vpop.f32.mrb[0].mxu0
        %1077 = vmatprep.mubr.f32.mxu0 0.0
        %1078 = vmatmul.mubr.f32.gmra.mrb[0].mxu0 %v839
        %v1079 = vpop.f32.mrb[0].mxu0
        %v1080 = vadd.f32 0.0, %v1079
        %v1081 = vpop.f32.mrb[0].mxu0
        %1082 = vmatprep.mubr.f32.mxu0 0.0
        %1083 = vmatmul.mubr.f32.gmra.mrb[0].mxu0 %v844
        %v1084 = vpop.f32.mrb[0].mxu0
        %v1085 = vadd.f32 0.0, %v1084
        %v1086 = vpop.f32.mrb[0].mxu0
        %1087 = vmatprep.mubr.f32.mxu0 0.0
        %1088 = vmatmul.mubr.f32.gmra.mrb[0].mxu0 %v849
        %v1089 = vpop.f32.mrb[0].mxu0
        %v1090 = vadd.f32 0.0, %v1089
        %v1091 = vpop.f32.mrb[0].mxu0
        %1092 = vmatprep.mubr.f32.mxu0 0.0
        %1093 = vmatmul.mubr.f32.gmra.mrb[0].mxu0 %v854
        %v1094 = vpop.f32.mrb[0].mxu0
        %v1095 = vadd.f32 0.0, %v1094
        %v1096 = vpop.f32.mrb[0].mxu0
        %1097 = vmatprep.mubr.f32.mxu0 0.0
        %1098 = vmatmul.mubr.f32.gmra.mrb[0].mxu0 %v859
        %v1099 = vpop.f32.mrb[0].mxu0
        %v1100 = vadd.f32 0.0, %v1099
        %v1101 = vpop.f32.mrb[0].mxu0
        %1102 = vmatprep.mubr.f32.mxu0 0.0
        %1103 = vmatmul.mubr.f32.gmra.mrb[0].mxu0 %v864
        %v1104 = vpop.f32.mrb[0].mxu0
        %v1105 = vadd.f32 0.0, %v1104
        %v1106 = vpop.f32.mrb[0].mxu0
        %1107 = vdwg.mxu0
        %s1108 = smul.u32 %s20, 256
        %v1109 = vmax.f32 %v950, 0.0
        %v1110 = vmax.f32 %v955, 0.0
        %v1111 = vmax.f32 %v960, 0.0
        %v1112 = vmax.f32 %v965, 0.0
        %v1113 = vmax.f32 %v970, 0.0
        %v1114 = vmax.f32 %v975, 0.0
        %v1115 = vmax.f32 %v980, 0.0
        %v1116 = vmax.f32 %v985, 0.0
        %v1117 = vmax.f32 %v990, 0.0
        %v1118 = vmax.f32 %v995, 0.0
        %v1119 = vmax.f32 %v1000, 0.0
        %v1120 = vmax.f32 %v1005, 0.0
        %v1121 = vmax.f32 %v1010, 0.0
        %v1122 = vmax.f32 %v1015, 0.0
        %v1123 = vmax.f32 %v1020, 0.0
        %v1124 = vmax.f32 %v1025, 0.0
        %v1125 = vmax.f32 %v1030, 0.0
        %v1126 = vmax.f32 %v1035, 0.0
        %v1127 = vmax.f32 %v1040, 0.0
        %v1128 = vmax.f32 %v1045, 0.0
        %v1129 = vmax.f32 %v1050, 0.0
        %v1130 = vmax.f32 %v1055, 0.0
        %v1131 = vmax.f32 %v1060, 0.0
        %v1132 = vmax.f32 %v1065, 0.0
        %v1133 = vmax.f32 %v1070, 0.0
        %v1134 = vmax.f32 %v1075, 0.0
        %v1135 = vmax.f32 %v1080, 0.0
        %v1136 = vmax.f32 %v1085, 0.0
        %v1137 = vmax.f32 %v1090, 0.0
        %v1138 = vmax.f32 %v1095, 0.0
        %v1139 = vmax.f32 %v1100, 0.0
        %v1140 = vmax.f32 %v1105, 0.0
        %s1141 = scalar_lea.vmem [#allocation2], %s1108
        %1142 = vst [vmem:[%s1141] sm:$0xff] %v1109
        %1143 = vst [vmem:[%s1141 + $0x8] sm:$0xff] %v1110
        %1144 = vst [vmem:[%s1141 + $0x10] sm:$0xff] %v1111
        %1145 = vst [vmem:[%s1141 + $0x18] sm:$0xff] %v1112
        %1146 = vst [vmem:[%s1141 + $0x20] sm:$0xff] %v1113
        %1147 = vst [vmem:[%s1141 + $0x28] sm:$0xff] %v1114
        %1148 = vst [vmem:[%s1141 + $0x30] sm:$0xff] %v1115
        %1149 = vst [vmem:[%s1141 + $0x38] sm:$0xff] %v1116
        %1150 = vst [vmem:[%s1141 + $0x40] sm:$0xff] %v1117
        %1151 = vst [vmem:[%s1141 + $0x48] sm:$0xff] %v1118
        %1152 = vst [vmem:[%s1141 + $0x50] sm:$0xff] %v1119
        %1153 = vst [vmem:[%s1141 + $0x58] sm:$0xff] %v1120
        %1154 = vst [vmem:[%s1141 + $0x60] sm:$0xff] %v1121
        %1155 = vst [vmem:[%s1141 + $0x68] sm:$0xff] %v1122
        %1156 = vst [vmem:[%s1141 + $0x70] sm:$0xff] %v1123
        %1157 = vst [vmem:[%s1141 + $0x78] sm:$0xff] %v1124
        %1158 = vst [vmem:[%s1141 + $0x80] sm:$0xff] %v1125
        %1159 = vst [vmem:[%s1141 + $0x88] sm:$0xff] %v1126
        %1160 = vst [vmem:[%s1141 + $0x90] sm:$0xff] %v1127
        %1161 = vst [vmem:[%s1141 + $0x98] sm:$0xff] %v1128
        %1162 = vst [vmem:[%s1141 + $0xa0] sm:$0xff] %v1129
        %1163 = vst [vmem:[%s1141 + $0xa8] sm:$0xff] %v1130
        %1164 = vst [vmem:[%s1141 + $0xb0] sm:$0xff] %v1131
        %1165 = vst [vmem:[%s1141 + $0xb8] sm:$0xff] %v1132
        %1166 = vst [vmem:[%s1141 + $0xc0] sm:$0xff] %v1133
        %1167 = vst [vmem:[%s1141 + $0xc8] sm:$0xff] %v1134
        %1168 = vst [vmem:[%s1141 + $0xd0] sm:$0xff] %v1135
        %1169 = vst [vmem:[%s1141 + $0xd8] sm:$0xff] %v1136
        %1170 = vst [vmem:[%s1141 + $0xe0] sm:$0xff] %v1137
        %1171 = vst [vmem:[%s1141 + $0xe8] sm:$0xff] %v1138
        %1172 = vst [vmem:[%s1141 + $0xf0] sm:$0xff] %v1139
        %1173 = vst [vmem:[%s1141 + $0xf8] sm:$0xff] %v1140
      $region40: #{gcn_forward.1} parent=35 // pred_fallthru
        _
      %p1174 = scmp.eq.s32.totalorder %s19, 1
      // Predicated region
      $region41: #{gcn_forward.1} parent=35 // pred_check
        %p1175 = pneg %p1174
      $region42: #{gcn_forward.1} parent=35 // pred_check_branch
        %1177 = sbr.rel (%p1175) target = $region44
      $region43: #{gcn_forward.1} parent=35 // pred_region
        %p1178 = scmp.eq.s32.totalorder %s20, 0
        // Predicated region
        $region45: #{gcn_forward.1} parent=43 // pred_check
          %p1179 = pneg %p1178
        $region46: #{gcn_forward.1} parent=43 // pred_check_branch
          %1181 = sbr.rel (%p1179) target = $region48
        $region47: #{gcn_forward.1} parent=43 // pred_region
          %v1182 = vld [vmem:[#allocation2] sm:$0xff]
          %v1183 = vld [vmem:[#allocation2 + $0x8] sm:$0xff]
          %v1184 = vld [vmem:[#allocation2 + $0x10] sm:$0xff]
          %v1185 = vld [vmem:[#allocation2 + $0x18] sm:$0xff]
          %v1186 = vld [vmem:[#allocation2 + $0x20] sm:$0xff]
          %v1187 = vld [vmem:[#allocation2 + $0x28] sm:$0xff]
          %v1188 = vld [vmem:[#allocation2 + $0x30] sm:$0xff]
          %v1189 = vld [vmem:[#allocation2 + $0x38] sm:$0xff]
          %v1190 = vld [vmem:[#allocation2 + $0x40] sm:$0xff]
          %v1191 = vld [vmem:[#allocation2 + $0x48] sm:$0xff]
          %v1192 = vld [vmem:[#allocation2 + $0x50] sm:$0xff]
          %v1193 = vld [vmem:[#allocation2 + $0x58] sm:$0xff]
          %v1194 = vld [vmem:[#allocation2 + $0x60] sm:$0xff]
          %v1195 = vld [vmem:[#allocation2 + $0x68] sm:$0xff]
          %v1196 = vld [vmem:[#allocation2 + $0x70] sm:$0xff]
          %v1197 = vld [vmem:[#allocation2 + $0x78] sm:$0xff]
          %v1198 = vld [vmem:[#allocation2 + $0x80] sm:$0xff]
          %v1199 = vld [vmem:[#allocation2 + $0x88] sm:$0xff]
          %v1200 = vld [vmem:[#allocation2 + $0x90] sm:$0xff]
          %v1201 = vld [vmem:[#allocation2 + $0x98] sm:$0xff]
          %v1202 = vld [vmem:[#allocation2 + $0xa0] sm:$0xff]
          %v1203 = vld [vmem:[#allocation2 + $0xa8] sm:$0xff]
          %v1204 = vld [vmem:[#allocation2 + $0xb0] sm:$0xff]
          %v1205 = vld [vmem:[#allocation2 + $0xb8] sm:$0xff]
          %v1206 = vld [vmem:[#allocation2 + $0xc0] sm:$0xff]
          %v1207 = vld [vmem:[#allocation2 + $0xc8] sm:$0xff]
          %v1208 = vld [vmem:[#allocation2 + $0xd0] sm:$0xff]
          %v1209 = vld [vmem:[#allocation2 + $0xd8] sm:$0xff]
          %v1210 = vld [vmem:[#allocation2 + $0xe0] sm:$0xff]
          %v1211 = vld [vmem:[#allocation2 + $0xe8] sm:$0xff]
          %v1212 = vld [vmem:[#allocation2 + $0xf0] sm:$0xff]
          %v1213 = vld [vmem:[#allocation2 + $0xf8] sm:$0xff]
          %v1214 = vld [vmem:[#allocation2 + $0x100] sm:$0xff]
          %v1215 = vld [vmem:[#allocation2 + $0x108] sm:$0xff]
          %v1216 = vld [vmem:[#allocation2 + $0x110] sm:$0xff]
          %v1217 = vld [vmem:[#allocation2 + $0x118] sm:$0xff]
          %v1218 = vld [vmem:[#allocation2 + $0x120] sm:$0xff]
          %v1219 = vld [vmem:[#allocation2 + $0x128] sm:$0xff]
          %v1220 = vld [vmem:[#allocation2 + $0x130] sm:$0xff]
          %v1221 = vld [vmem:[#allocation2 + $0x138] sm:$0xff]
          %v1222 = vld [vmem:[#allocation2 + $0x140] sm:$0xff]
          %v1223 = vld [vmem:[#allocation2 + $0x148] sm:$0xff]
          %v1224 = vld [vmem:[#allocation2 + $0x150] sm:$0xff]
          %v1225 = vld [vmem:[#allocation2 + $0x158] sm:$0xff]
          %v1226 = vld [vmem:[#allocation2 + $0x160] sm:$0xff]
          %v1227 = vld [vmem:[#allocation2 + $0x168] sm:$0xff]
          %v1228 = vld [vmem:[#allocation2 + $0x170] sm:$0xff]
          %v1229 = vld [vmem:[#allocation2 + $0x178] sm:$0xff]
          %v1230 = vld [vmem:[#allocation2 + $0x180] sm:$0xff]
          %v1231 = vld [vmem:[#allocation2 + $0x188] sm:$0xff]
          %v1232 = vld [vmem:[#allocation2 + $0x190] sm:$0xff]
          %v1233 = vld [vmem:[#allocation2 + $0x198] sm:$0xff]
          %v1234 = vld [vmem:[#allocation2 + $0x1a0] sm:$0xff]
          %v1235 = vld [vmem:[#allocation2 + $0x1a8] sm:$0xff]
          %v1236 = vld [vmem:[#allocation2 + $0x1b0] sm:$0xff]
          %v1237 = vld [vmem:[#allocation2 + $0x1b8] sm:$0xff]
          %v1238 = vld [vmem:[#allocation2 + $0x1c0] sm:$0xff]
          %v1239 = vld [vmem:[#allocation2 + $0x1c8] sm:$0xff]
          %v1240 = vld [vmem:[#allocation2 + $0x1d0] sm:$0xff]
          %v1241 = vld [vmem:[#allocation2 + $0x1d8] sm:$0xff]
          %v1242 = vld [vmem:[#allocation2 + $0x1e0] sm:$0xff]
          %v1243 = vld [vmem:[#allocation2 + $0x1e8] sm:$0xff]
          %v1244 = vld [vmem:[#allocation2 + $0x1f0] sm:$0xff]
          %v1245 = vld [vmem:[#allocation2 + $0x1f8] sm:$0xff]
          %v1246 = vld [vmem:[%s3] sm:$0xff]
          %v1247 = vld [vmem:[%s3 + $0x8] sm:$0xff]
          %v1248 = vld [vmem:[%s3 + $0x10] sm:$0xff]
          %v1249 = vld [vmem:[%s3 + $0x18] sm:$0xff]
          %v1250 = vld [vmem:[%s3 + $0x20] sm:$0xff]
          %v1251 = vld [vmem:[%s3 + $0x28] sm:$0xff]
          %v1252 = vld [vmem:[%s3 + $0x30] sm:$0xff]
          %v1253 = vld [vmem:[%s3 + $0x38] sm:$0xff]
          %v1254 = vld [vmem:[%s3 + $0x40] sm:$0xff]
          %v1255 = vld [vmem:[%s3 + $0x48] sm:$0xff]
          %v1256 = vld [vmem:[%s3 + $0x50] sm:$0xff]
          %v1257 = vld [vmem:[%s3 + $0x58] sm:$0xff]
          %v1258 = vld [vmem:[%s3 + $0x60] sm:$0xff]
          %v1259 = vld [vmem:[%s3 + $0x68] sm:$0xff]
          %v1260 = vld [vmem:[%s3 + $0x70] sm:$0xff]
          %v1261 = vld [vmem:[%s3 + $0x78] sm:$0xff]
          %1262 = vmatprep.subr.mxu0 0.0
          %1263 = vmatpush1.msra.mxu0 %v1246
          %1264 = vmatprep.subr.mxu0 0.0
          %1265 = vmatpush1.msra.mxu0 %v1247
          %1266 = vmatprep.subr.mxu0 0.0
          %1267 = vmatpush1.msra.mxu0 %v1248
          %1268 = vmatprep.subr.mxu0 0.0
          %1269 = vmatpush1.msra.mxu0 %v1249
          %1270 = vmatprep.subr.mxu0 0.0
          %1271 = vmatpush1.msra.mxu0 %v1250
          %1272 = vmatprep.subr.mxu0 0.0
          %1273 = vmatpush1.msra.mxu0 %v1251
          %1274 = vmatprep.subr.mxu0 0.0
          %1275 = vmatpush1.msra.mxu0 %v1252
          %1276 = vmatprep.subr.mxu0 0.0
          %1277 = vmatpush1.msra.mxu0 %v1253
          %1278 = vmatprep.subr.mxu0 0.0
          %1279 = vmatpush1.msra.mxu0 %v1254
          %1280 = vmatprep.subr.mxu0 0.0
          %1281 = vmatpush1.msra.mxu0 %v1255
          %1282 = vmatprep.subr.mxu0 0.0
          %1283 = vmatpush1.msra.mxu0 %v1256
          %1284 = vmatprep.subr.mxu0 0.0
          %1285 = vmatpush1.msra.mxu0 %v1257
          %1286 = vmatprep.subr.mxu0 0.0
          %1287 = vmatpush1.msra.mxu0 %v1258
          %1288 = vmatprep.subr.mxu0 0.0
          %1289 = vmatpush1.msra.mxu0 %v1259
          %1290 = vmatprep.subr.mxu0 0.0
          %1291 = vmatpush1.msra.mxu0 %v1260
          %1292 = vmatprep.subr.mxu0 0.0
          %1293 = vmatpush1.msra.mxu0 %v1261
          %1294 = vmatprep.subr.mxu0 0.0
          %1295 = vmatpush1.msra.mxu0 0.0
          %1296 = vmatprep.subr.mxu0 0.0
          %1297 = vmatpush1.msra.mxu0 0.0
          %1298 = vmatprep.subr.mxu0 0.0
          %1299 = vmatpush1.msra.mxu0 0.0
          %1300 = vmatprep.subr.mxu0 0.0
          %1301 = vmatpush1.msra.mxu0 0.0
          %1302 = vmatprep.subr.mxu0 0.0
          %1303 = vmatpush1.msra.mxu0 0.0
          %1304 = vmatprep.subr.mxu0 0.0
          %1305 = vmatpush1.msra.mxu0 0.0
          %1306 = vmatprep.subr.mxu0 0.0
          %1307 = vmatpush1.msra.mxu0 0.0
          %1308 = vmatprep.subr.mxu0 0.0
          %1309 = vmatpush1.msra.mxu0 0.0
          %1310 = vmatprep.subr.mxu0 0.0
          %1311 = vmatpush1.msra.mxu0 0.0
          %1312 = vmatprep.subr.mxu0 0.0
          %1313 = vmatpush1.msra.mxu0 0.0
          %1314 = vmatprep.subr.mxu0 0.0
          %1315 = vmatpush1.msra.mxu0 0.0
          %1316 = vmatprep.subr.mxu0 0.0
          %1317 = vmatpush1.msra.mxu0 0.0
          %1318 = vmatprep.subr.mxu0 0.0
          %1319 = vmatpush1.msra.mxu0 0.0
          %1320 = vmatprep.subr.mxu0 0.0
          %1321 = vmatpush1.msra.mxu0 0.0
          %1322 = vmatprep.subr.mxu0 0.0
          %1323 = vmatpush1.msra.mxu0 0.0
          %1324 = vmatprep.subr.mxu0 0.0
          %1325 = vmatpush1.msra.mxu0 0.0
          %1326 = vmatprep.mubr.f32.mxu0 0.0
          %1327 = vmatmul.mubr.f32.gmra.mrb[0].mxu0 %v1182
          %v1328 = vpop.f32.mrb[0].mxu0
          %v1329 = vadd.f32 0.0, %v1328
          %v1330 = vpop.f32.mrb[0].mxu0
          %1331 = vmatprep.mubr.f32.mxu0 0.0
          %1332 = vmatmul.mubr.f32.gmra.mrb[0].mxu0 %v1183
          %v1333 = vpop.f32.mrb[0].mxu0
          %v1334 = vadd.f32 0.0, %v1333
          %v1335 = vpop.f32.mrb[0].mxu0
          %1336 = vmatprep.mubr.f32.mxu0 0.0
          %1337 = vmatmul.mubr.f32.gmra.mrb[0].mxu0 %v1184
          %v1338 = vpop.f32.mrb[0].mxu0
          %v1339 = vadd.f32 0.0, %v1338
          %v1340 = vpop.f32.mrb[0].mxu0
          %1341 = vmatprep.mubr.f32.mxu0 0.0
          %1342 = vmatmul.mubr.f32.gmra.mrb[0].mxu0 %v1185
          %v1343 = vpop.f32.mrb[0].mxu0
          %v1344 = vadd.f32 0.0, %v1343
          %v1345 = vpop.f32.mrb[0].mxu0
          %1346 = vmatprep.mubr.f32.mxu0 0.0
          %1347 = vmatmul.mubr.f32.gmra.mrb[0].mxu0 %v1186
          %v1348 = vpop.f32.mrb[0].mxu0
          %v1349 = vadd.f32 0.0, %v1348
          %v1350 = vpop.f32.mrb[0].mxu0
          %1351 = vmatprep.mubr.f32.mxu0 0.0
          %1352 = vmatmul.mubr.f32.gmra.mrb[0].mxu0 %v1187
          %v1353 = vpop.f32.mrb[0].mxu0
          %v1354 = vadd.f32 0.0, %v1353
          %v1355 = vpop.f32.mrb[0].mxu0
          %1356 = vmatprep.mubr.f32.mxu0 0.0
          %1357 = vmatmul.mubr.f32.gmra.mrb[0].mxu0 %v1188
          %v1358 = vpop.f32.mrb[0].mxu0
          %v1359 = vadd.f32 0.0, %v1358
          %v1360 = vpop.f32.mrb[0].mxu0
          %1361 = vmatprep.mubr.f32.mxu0 0.0
          %1362 = vmatmul.mubr.f32.gmra.mrb[0].mxu0 %v1189
          %v1363 = vpop.f32.mrb[0].mxu0
          %v1364 = vadd.f32 0.0, %v1363
          %v1365 = vpop.f32.mrb[0].mxu0
          %1366 = vmatprep.mubr.f32.mxu0 0.0
          %1367 = vmatmul.mubr.f32.gmra.mrb[0].mxu0 %v1190
          %v1368 = vpop.f32.mrb[0].mxu0
          %v1369 = vadd.f32 0.0, %v1368
          %v1370 = vpop.f32.mrb[0].mxu0
          %1371 = vmatprep.mubr.f32.mxu0 0.0
          %1372 = vmatmul.mubr.f32.gmra.mrb[0].mxu0 %v1191
          %v1373 = vpop.f32.mrb[0].mxu0
          %v1374 = vadd.f32 0.0, %v1373
          %v1375 = vpop.f32.mrb[0].mxu0
          %1376 = vmatprep.mubr.f32.mxu0 0.0
          %1377 = vmatmul.mubr.f32.gmra.mrb[0].mxu0 %v1192
          %v1378 = vpop.f32.mrb[0].mxu0
          %v1379 = vadd.f32 0.0, %v1378
          %v1380 = vpop.f32.mrb[0].mxu0
          %1381 = vmatprep.mubr.f32.mxu0 0.0
          %1382 = vmatmul.mubr.f32.gmra.mrb[0].mxu0 %v1193
          %v1383 = vpop.f32.mrb[0].mxu0
          %v1384 = vadd.f32 0.0, %v1383
          %v1385 = vpop.f32.mrb[0].mxu0
          %1386 = vmatprep.mubr.f32.mxu0 0.0
          %1387 = vmatmul.mubr.f32.gmra.mrb[0].mxu0 %v1194
          %v1388 = vpop.f32.mrb[0].mxu0
          %v1389 = vadd.f32 0.0, %v1388
          %v1390 = vpop.f32.mrb[0].mxu0
          %1391 = vmatprep.mubr.f32.mxu0 0.0
          %1392 = vmatmul.mubr.f32.gmra.mrb[0].mxu0 %v1195
          %v1393 = vpop.f32.mrb[0].mxu0
          %v1394 = vadd.f32 0.0, %v1393
          %v1395 = vpop.f32.mrb[0].mxu0
          %1396 = vmatprep.mubr.f32.mxu0 0.0
          %1397 = vmatmul.mubr.f32.gmra.mrb[0].mxu0 %v1196
          %v1398 = vpop.f32.mrb[0].mxu0
          %v1399 = vadd.f32 0.0, %v1398
          %v1400 = vpop.f32.mrb[0].mxu0
          %1401 = vmatprep.mubr.f32.mxu0 0.0
          %1402 = vmatmul.mubr.f32.gmra.mrb[0].mxu0 %v1197
          %v1403 = vpop.f32.mrb[0].mxu0
          %v1404 = vadd.f32 0.0, %v1403
          %v1405 = vpop.f32.mrb[0].mxu0
          %1406 = vmatprep.mubr.f32.mxu0 0.0
          %1407 = vmatmul.mubr.f32.gmra.mrb[0].mxu0 %v1198
          %v1408 = vpop.f32.mrb[0].mxu0
          %v1409 = vadd.f32 0.0, %v1408
          %v1410 = vpop.f32.mrb[0].mxu0
          %1411 = vmatprep.mubr.f32.mxu0 0.0
          %1412 = vmatmul.mubr.f32.gmra.mrb[0].mxu0 %v1199
          %v1413 = vpop.f32.mrb[0].mxu0
          %v1414 = vadd.f32 0.0, %v1413
          %v1415 = vpop.f32.mrb[0].mxu0
          %1416 = vmatprep.mubr.f32.mxu0 0.0
          %1417 = vmatmul.mubr.f32.gmra.mrb[0].mxu0 %v1200
          %v1418 = vpop.f32.mrb[0].mxu0
          %v1419 = vadd.f32 0.0, %v1418
          %v1420 = vpop.f32.mrb[0].mxu0
          %1421 = vmatprep.mubr.f32.mxu0 0.0
          %1422 = vmatmul.mubr.f32.gmra.mrb[0].mxu0 %v1201
          %v1423 = vpop.f32.mrb[0].mxu0
          %v1424 = vadd.f32 0.0, %v1423
          %v1425 = vpop.f32.mrb[0].mxu0
          %1426 = vmatprep.mubr.f32.mxu0 0.0
          %1427 = vmatmul.mubr.f32.gmra.mrb[0].mxu0 %v1202
          %v1428 = vpop.f32.mrb[0].mxu0
          %v1429 = vadd.f32 0.0, %v1428
          %v1430 = vpop.f32.mrb[0].mxu0
          %1431 = vmatprep.mubr.f32.mxu0 0.0
          %1432 = vmatmul.mubr.f32.gmra.mrb[0].mxu0 %v1203
          %v1433 = vpop.f32.mrb[0].mxu0
          %v1434 = vadd.f32 0.0, %v1433
          %v1435 = vpop.f32.mrb[0].mxu0
          %1436 = vmatprep.mubr.f32.mxu0 0.0
          %1437 = vmatmul.mubr.f32.gmra.mrb[0].mxu0 %v1204
          %v1438 = vpop.f32.mrb[0].mxu0
          %v1439 = vadd.f32 0.0, %v1438
          %v1440 = vpop.f32.mrb[0].mxu0
          %1441 = vmatprep.mubr.f32.mxu0 0.0
          %1442 = vmatmul.mubr.f32.gmra.mrb[0].mxu0 %v1205
          %v1443 = vpop.f32.mrb[0].mxu0
          %v1444 = vadd.f32 0.0, %v1443
          %v1445 = vpop.f32.mrb[0].mxu0
          %1446 = vmatprep.mubr.f32.mxu0 0.0
          %1447 = vmatmul.mubr.f32.gmra.mrb[0].mxu0 %v1206
          %v1448 = vpop.f32.mrb[0].mxu0
          %v1449 = vadd.f32 0.0, %v1448
          %v1450 = vpop.f32.mrb[0].mxu0
          %1451 = vmatprep.mubr.f32.mxu0 0.0
          %1452 = vmatmul.mubr.f32.gmra.mrb[0].mxu0 %v1207
          %v1453 = vpop.f32.mrb[0].mxu0
          %v1454 = vadd.f32 0.0, %v1453
          %v1455 = vpop.f32.mrb[0].mxu0
          %1456 = vmatprep.mubr.f32.mxu0 0.0
          %1457 = vmatmul.mubr.f32.gmra.mrb[0].mxu0 %v1208
          %v1458 = vpop.f32.mrb[0].mxu0
          %v1459 = vadd.f32 0.0, %v1458
          %v1460 = vpop.f32.mrb[0].mxu0
          %1461 = vmatprep.mubr.f32.mxu0 0.0
          %1462 = vmatmul.mubr.f32.gmra.mrb[0].mxu0 %v1209
          %v1463 = vpop.f32.mrb[0].mxu0
          %v1464 = vadd.f32 0.0, %v1463
          %v1465 = vpop.f32.mrb[0].mxu0
          %1466 = vmatprep.mubr.f32.mxu0 0.0
          %1467 = vmatmul.mubr.f32.gmra.mrb[0].mxu0 %v1210
          %v1468 = vpop.f32.mrb[0].mxu0
          %v1469 = vadd.f32 0.0, %v1468
          %v1470 = vpop.f32.mrb[0].mxu0
          %1471 = vmatprep.mubr.f32.mxu0 0.0
          %1472 = vmatmul.mubr.f32.gmra.mrb[0].mxu0 %v1211
          %v1473 = vpop.f32.mrb[0].mxu0
          %v1474 = vadd.f32 0.0, %v1473
          %v1475 = vpop.f32.mrb[0].mxu0
          %1476 = vmatprep.mubr.f32.mxu0 0.0
          %1477 = vmatmul.mubr.f32.gmra.mrb[0].mxu0 %v1212
          %v1478 = vpop.f32.mrb[0].mxu0
          %v1479 = vadd.f32 0.0, %v1478
          %v1480 = vpop.f32.mrb[0].mxu0
          %1481 = vmatprep.mubr.f32.mxu0 0.0
          %1482 = vmatmul.mubr.f32.gmra.mrb[0].mxu0 %v1213
          %v1483 = vpop.f32.mrb[0].mxu0
          %v1484 = vadd.f32 0.0, %v1483
          %v1485 = vpop.f32.mrb[0].mxu0
          %1486 = vmatprep.mubr.f32.mxu0 0.0
          %1487 = vmatmul.mubr.f32.gmra.mrb[0].mxu0 %v1214
          %v1488 = vpop.f32.mrb[0].mxu0
          %v1489 = vadd.f32 0.0, %v1488
          %v1490 = vpop.f32.mrb[0].mxu0
          %1491 = vmatprep.mubr.f32.mxu0 0.0
          %1492 = vmatmul.mubr.f32.gmra.mrb[0].mxu0 %v1215
          %v1493 = vpop.f32.mrb[0].mxu0
          %v1494 = vadd.f32 0.0, %v1493
          %v1495 = vpop.f32.mrb[0].mxu0
          %1496 = vmatprep.mubr.f32.mxu0 0.0
          %1497 = vmatmul.mubr.f32.gmra.mrb[0].mxu0 %v1216
          %v1498 = vpop.f32.mrb[0].mxu0
          %v1499 = vadd.f32 0.0, %v1498
          %v1500 = vpop.f32.mrb[0].mxu0
          %1501 = vmatprep.mubr.f32.mxu0 0.0
          %1502 = vmatmul.mubr.f32.gmra.mrb[0].mxu0 %v1217
          %v1503 = vpop.f32.mrb[0].mxu0
          %v1504 = vadd.f32 0.0, %v1503
          %v1505 = vpop.f32.mrb[0].mxu0
          %1506 = vmatprep.mubr.f32.mxu0 0.0
          %1507 = vmatmul.mubr.f32.gmra.mrb[0].mxu0 %v1218
          %v1508 = vpop.f32.mrb[0].mxu0
          %v1509 = vadd.f32 0.0, %v1508
          %v1510 = vpop.f32.mrb[0].mxu0
          %1511 = vmatprep.mubr.f32.mxu0 0.0
          %1512 = vmatmul.mubr.f32.gmra.mrb[0].mxu0 %v1219
          %v1513 = vpop.f32.mrb[0].mxu0
          %v1514 = vadd.f32 0.0, %v1513
          %v1515 = vpop.f32.mrb[0].mxu0
          %1516 = vmatprep.mubr.f32.mxu0 0.0
          %1517 = vmatmul.mubr.f32.gmra.mrb[0].mxu0 %v1220
          %v1518 = vpop.f32.mrb[0].mxu0
          %v1519 = vadd.f32 0.0, %v1518
          %v1520 = vpop.f32.mrb[0].mxu0
          %1521 = vmatprep.mubr.f32.mxu0 0.0
          %1522 = vmatmul.mubr.f32.gmra.mrb[0].mxu0 %v1221
          %v1523 = vpop.f32.mrb[0].mxu0
          %v1524 = vadd.f32 0.0, %v1523
          %v1525 = vpop.f32.mrb[0].mxu0
          %1526 = vmatprep.mubr.f32.mxu0 0.0
          %1527 = vmatmul.mubr.f32.gmra.mrb[0].mxu0 %v1222
          %v1528 = vpop.f32.mrb[0].mxu0
          %v1529 = vadd.f32 0.0, %v1528
          %v1530 = vpop.f32.mrb[0].mxu0
          %1531 = vmatprep.mubr.f32.mxu0 0.0
          %1532 = vmatmul.mubr.f32.gmra.mrb[0].mxu0 %v1223
          %v1533 = vpop.f32.mrb[0].mxu0
          %v1534 = vadd.f32 0.0, %v1533
          %v1535 = vpop.f32.mrb[0].mxu0
          %1536 = vmatprep.mubr.f32.mxu0 0.0
          %1537 = vmatmul.mubr.f32.gmra.mrb[0].mxu0 %v1224
          %v1538 = vpop.f32.mrb[0].mxu0
          %v1539 = vadd.f32 0.0, %v1538
          %v1540 = vpop.f32.mrb[0].mxu0
          %1541 = vmatprep.mubr.f32.mxu0 0.0
          %1542 = vmatmul.mubr.f32.gmra.mrb[0].mxu0 %v1225
          %v1543 = vpop.f32.mrb[0].mxu0
          %v1544 = vadd.f32 0.0, %v1543
          %v1545 = vpop.f32.mrb[0].mxu0
          %1546 = vmatprep.mubr.f32.mxu0 0.0
          %1547 = vmatmul.mubr.f32.gmra.mrb[0].mxu0 %v1226
          %v1548 = vpop.f32.mrb[0].mxu0
          %v1549 = vadd.f32 0.0, %v1548
          %v1550 = vpop.f32.mrb[0].mxu0
          %1551 = vmatprep.mubr.f32.mxu0 0.0
          %1552 = vmatmul.mubr.f32.gmra.mrb[0].mxu0 %v1227
          %v1553 = vpop.f32.mrb[0].mxu0
          %v1554 = vadd.f32 0.0, %v1553
          %v1555 = vpop.f32.mrb[0].mxu0
          %1556 = vmatprep.mubr.f32.mxu0 0.0
          %1557 = vmatmul.mubr.f32.gmra.mrb[0].mxu0 %v1228
          %v1558 = vpop.f32.mrb[0].mxu0
          %v1559 = vadd.f32 0.0, %v1558
          %v1560 = vpop.f32.mrb[0].mxu0
          %1561 = vmatprep.mubr.f32.mxu0 0.0
          %1562 = vmatmul.mubr.f32.gmra.mrb[0].mxu0 %v1229
          %v1563 = vpop.f32.mrb[0].mxu0
          %v1564 = vadd.f32 0.0, %v1563
          %v1565 = vpop.f32.mrb[0].mxu0
          %1566 = vmatprep.mubr.f32.mxu0 0.0
          %1567 = vmatmul.mubr.f32.gmra.mrb[0].mxu0 %v1230
          %v1568 = vpop.f32.mrb[0].mxu0
          %v1569 = vadd.f32 0.0, %v1568
          %v1570 = vpop.f32.mrb[0].mxu0
          %1571 = vmatprep.mubr.f32.mxu0 0.0
          %1572 = vmatmul.mubr.f32.gmra.mrb[0].mxu0 %v1231
          %v1573 = vpop.f32.mrb[0].mxu0
          %v1574 = vadd.f32 0.0, %v1573
          %v1575 = vpop.f32.mrb[0].mxu0
          %1576 = vmatprep.mubr.f32.mxu0 0.0
          %1577 = vmatmul.mubr.f32.gmra.mrb[0].mxu0 %v1232
          %v1578 = vpop.f32.mrb[0].mxu0
          %v1579 = vadd.f32 0.0, %v1578
          %v1580 = vpop.f32.mrb[0].mxu0
          %1581 = vmatprep.mubr.f32.mxu0 0.0
          %1582 = vmatmul.mubr.f32.gmra.mrb[0].mxu0 %v1233
          %v1583 = vpop.f32.mrb[0].mxu0
          %v1584 = vadd.f32 0.0, %v1583
          %v1585 = vpop.f32.mrb[0].mxu0
          %1586 = vmatprep.mubr.f32.mxu0 0.0
          %1587 = vmatmul.mubr.f32.gmra.mrb[0].mxu0 %v1234
          %v1588 = vpop.f32.mrb[0].mxu0
          %v1589 = vadd.f32 0.0, %v1588
          %v1590 = vpop.f32.mrb[0].mxu0
          %1591 = vmatprep.mubr.f32.mxu0 0.0
          %1592 = vmatmul.mubr.f32.gmra.mrb[0].mxu0 %v1235
          %v1593 = vpop.f32.mrb[0].mxu0
          %v1594 = vadd.f32 0.0, %v1593
          %v1595 = vpop.f32.mrb[0].mxu0
          %1596 = vmatprep.mubr.f32.mxu0 0.0
          %1597 = vmatmul.mubr.f32.gmra.mrb[0].mxu0 %v1236
          %v1598 = vpop.f32.mrb[0].mxu0
          %v1599 = vadd.f32 0.0, %v1598
          %v1600 = vpop.f32.mrb[0].mxu0
          %1601 = vmatprep.mubr.f32.mxu0 0.0
          %1602 = vmatmul.mubr.f32.gmra.mrb[0].mxu0 %v1237
          %v1603 = vpop.f32.mrb[0].mxu0
          %v1604 = vadd.f32 0.0, %v1603
          %v1605 = vpop.f32.mrb[0].mxu0
          %1606 = vmatprep.mubr.f32.mxu0 0.0
          %1607 = vmatmul.mubr.f32.gmra.mrb[0].mxu0 %v1238
          %v1608 = vpop.f32.mrb[0].mxu0
          %v1609 = vadd.f32 0.0, %v1608
          %v1610 = vpop.f32.mrb[0].mxu0
          %1611 = vmatprep.mubr.f32.mxu0 0.0
          %1612 = vmatmul.mubr.f32.gmra.mrb[0].mxu0 %v1239
          %v1613 = vpop.f32.mrb[0].mxu0
          %v1614 = vadd.f32 0.0, %v1613
          %v1615 = vpop.f32.mrb[0].mxu0
          %1616 = vmatprep.mubr.f32.mxu0 0.0
          %1617 = vmatmul.mubr.f32.gmra.mrb[0].mxu0 %v1240
          %v1618 = vpop.f32.mrb[0].mxu0
          %v1619 = vadd.f32 0.0, %v1618
          %v1620 = vpop.f32.mrb[0].mxu0
          %1621 = vmatprep.mubr.f32.mxu0 0.0
          %1622 = vmatmul.mubr.f32.gmra.mrb[0].mxu0 %v1241
          %v1623 = vpop.f32.mrb[0].mxu0
          %v1624 = vadd.f32 0.0, %v1623
          %v1625 = vpop.f32.mrb[0].mxu0
          %1626 = vmatprep.mubr.f32.mxu0 0.0
          %1627 = vmatmul.mubr.f32.gmra.mrb[0].mxu0 %v1242
          %v1628 = vpop.f32.mrb[0].mxu0
          %v1629 = vadd.f32 0.0, %v1628
          %v1630 = vpop.f32.mrb[0].mxu0
          %1631 = vmatprep.mubr.f32.mxu0 0.0
          %1632 = vmatmul.mubr.f32.gmra.mrb[0].mxu0 %v1243
          %v1633 = vpop.f32.mrb[0].mxu0
          %v1634 = vadd.f32 0.0, %v1633
          %v1635 = vpop.f32.mrb[0].mxu0
          %1636 = vmatprep.mubr.f32.mxu0 0.0
          %1637 = vmatmul.mubr.f32.gmra.mrb[0].mxu0 %v1244
          %v1638 = vpop.f32.mrb[0].mxu0
          %v1639 = vadd.f32 0.0, %v1638
          %v1640 = vpop.f32.mrb[0].mxu0
          %1641 = vmatprep.mubr.f32.mxu0 0.0
          %1642 = vmatmul.mubr.f32.gmra.mrb[0].mxu0 %v1245
          %v1643 = vpop.f32.mrb[0].mxu0
          %v1644 = vadd.f32 0.0, %v1643
          %v1645 = vpop.f32.mrb[0].mxu0
          %1646 = vdwg.mxu0
          %1647 = vst [vmem:[#allocation3] sm:$0xff] %v1329
          %1648 = vst [vmem:[#allocation3 + $0x8] sm:$0xff] %v1334
          %1649 = vst [vmem:[#allocation3 + $0x10] sm:$0xff] %v1339
          %1650 = vst [vmem:[#allocation3 + $0x18] sm:$0xff] %v1344
          %1651 = vst [vmem:[#allocation3 + $0x20] sm:$0xff] %v1349
          %1652 = vst [vmem:[#allocation3 + $0x28] sm:$0xff] %v1354
          %1653 = vst [vmem:[#allocation3 + $0x30] sm:$0xff] %v1359
          %1654 = vst [vmem:[#allocation3 + $0x38] sm:$0xff] %v1364
          %1655 = vst [vmem:[#allocation3 + $0x40] sm:$0xff] %v1369
          %1656 = vst [vmem:[#allocation3 + $0x48] sm:$0xff] %v1374
          %1657 = vst [vmem:[#allocation3 + $0x50] sm:$0xff] %v1379
          %1658 = vst [vmem:[#allocation3 + $0x58] sm:$0xff] %v1384
          %1659 = vst [vmem:[#allocation3 + $0x60] sm:$0xff] %v1389
          %1660 = vst [vmem:[#allocation3 + $0x68] sm:$0xff] %v1394
          %1661 = vst [vmem:[#allocation3 + $0x70] sm:$0xff] %v1399
          %1662 = vst [vmem:[#allocation3 + $0x78] sm:$0xff] %v1404
          %1663 = vst [vmem:[#allocation3 + $0x80] sm:$0xff] %v1409
          %1664 = vst [vmem:[#allocation3 + $0x88] sm:$0xff] %v1414
          %1665 = vst [vmem:[#allocation3 + $0x90] sm:$0xff] %v1419
          %1666 = vst [vmem:[#allocation3 + $0x98] sm:$0xff] %v1424
          %1667 = vst [vmem:[#allocation3 + $0xa0] sm:$0xff] %v1429
          %1668 = vst [vmem:[#allocation3 + $0xa8] sm:$0xff] %v1434
          %1669 = vst [vmem:[#allocation3 + $0xb0] sm:$0xff] %v1439
          %1670 = vst [vmem:[#allocation3 + $0xb8] sm:$0xff] %v1444
          %1671 = vst [vmem:[#allocation3 + $0xc0] sm:$0xff] %v1449
          %1672 = vst [vmem:[#allocation3 + $0xc8] sm:$0xff] %v1454
          %1673 = vst [vmem:[#allocation3 + $0xd0] sm:$0xff] %v1459
          %1674 = vst [vmem:[#allocation3 + $0xd8] sm:$0xff] %v1464
          %1675 = vst [vmem:[#allocation3 + $0xe0] sm:$0xff] %v1469
          %1676 = vst [vmem:[#allocation3 + $0xe8] sm:$0xff] %v1474
          %1677 = vst [vmem:[#allocation3 + $0xf0] sm:$0xff] %v1479
          %1678 = vst [vmem:[#allocation3 + $0xf8] sm:$0xff] %v1484
          %1679 = vst [vmem:[#allocation3 + $0x100] sm:$0xff] %v1489
          %1680 = vst [vmem:[#allocation3 + $0x108] sm:$0xff] %v1494
          %1681 = vst [vmem:[#allocation3 + $0x110] sm:$0xff] %v1499
          %1682 = vst [vmem:[#allocation3 + $0x118] sm:$0xff] %v1504
          %1683 = vst [vmem:[#allocation3 + $0x120] sm:$0xff] %v1509
          %1684 = vst [vmem:[#allocation3 + $0x128] sm:$0xff] %v1514
          %1685 = vst [vmem:[#allocation3 + $0x130] sm:$0xff] %v1519
          %1686 = vst [vmem:[#allocation3 + $0x138] sm:$0xff] %v1524
          %1687 = vst [vmem:[#allocation3 + $0x140] sm:$0xff] %v1529
          %1688 = vst [vmem:[#allocation3 + $0x148] sm:$0xff] %v1534
          %1689 = vst [vmem:[#allocation3 + $0x150] sm:$0xff] %v1539
          %1690 = vst [vmem:[#allocation3 + $0x158] sm:$0xff] %v1544
          %1691 = vst [vmem:[#allocation3 + $0x160] sm:$0xff] %v1549
          %1692 = vst [vmem:[#allocation3 + $0x168] sm:$0xff] %v1554
          %1693 = vst [vmem:[#allocation3 + $0x170] sm:$0xff] %v1559
          %1694 = vst [vmem:[#allocation3 + $0x178] sm:$0xff] %v1564
          %1695 = vst [vmem:[#allocation3 + $0x180] sm:$0xff] %v1569
          %1696 = vst [vmem:[#allocation3 + $0x188] sm:$0xff] %v1574
          %1697 = vst [vmem:[#allocation3 + $0x190] sm:$0xff] %v1579
          %1698 = vst [vmem:[#allocation3 + $0x198] sm:$0xff] %v1584
          %1699 = vst [vmem:[#allocation3 + $0x1a0] sm:$0xff] %v1589
          %1700 = vst [vmem:[#allocation3 + $0x1a8] sm:$0xff] %v1594
          %1701 = vst [vmem:[#allocation3 + $0x1b0] sm:$0xff] %v1599
          %1702 = vst [vmem:[#allocation3 + $0x1b8] sm:$0xff] %v1604
          %1703 = vst [vmem:[#allocation3 + $0x1c0] sm:$0xff] %v1609
          %1704 = vst [vmem:[#allocation3 + $0x1c8] sm:$0xff] %v1614
          %1705 = vst [vmem:[#allocation3 + $0x1d0] sm:$0xff] %v1619
          %1706 = vst [vmem:[#allocation3 + $0x1d8] sm:$0xff] %v1624
          %1707 = vst [vmem:[#allocation3 + $0x1e0] sm:$0xff] %v1629
          %1708 = vst [vmem:[#allocation3 + $0x1e8] sm:$0xff] %v1634
          %1709 = vst [vmem:[#allocation3 + $0x1f0] sm:$0xff] %v1639
          %1710 = vst [vmem:[#allocation3 + $0x1f8] sm:$0xff] %v1644
        $region48: #{gcn_forward.1} parent=43 // pred_fallthru
          _
        %v1711 = vld [vmem:[%s211] sm:$0xff]
        %v1712 = vld [vmem:[%s211 + $0x8] sm:$0xff]
        %v1713 = vld [vmem:[%s211 + $0x10] sm:$0xff]
        %v1714 = vld [vmem:[%s211 + $0x18] sm:$0xff]
        %v1715 = vld [vmem:[%s211 + $0x20] sm:$0xff]
        %v1716 = vld [vmem:[%s211 + $0x28] sm:$0xff]
        %v1717 = vld [vmem:[%s211 + $0x30] sm:$0xff]
        %v1718 = vld [vmem:[%s211 + $0x38] sm:$0xff]
        %v1719 = vld [vmem:[%s211 + $0x40] sm:$0xff]
        %v1720 = vld [vmem:[%s211 + $0x48] sm:$0xff]
        %v1721 = vld [vmem:[%s211 + $0x50] sm:$0xff]
        %v1722 = vld [vmem:[%s211 + $0x58] sm:$0xff]
        %v1723 = vld [vmem:[%s211 + $0x60] sm:$0xff]
        %v1724 = vld [vmem:[%s211 + $0x68] sm:$0xff]
        %v1725 = vld [vmem:[%s211 + $0x70] sm:$0xff]
        %v1726 = vld [vmem:[%s211 + $0x78] sm:$0xff]
        %v1727 = vld [vmem:[%s211 + $0x80] sm:$0xff]
        %v1728 = vld [vmem:[%s211 + $0x88] sm:$0xff]
        %v1729 = vld [vmem:[%s211 + $0x90] sm:$0xff]
        %v1730 = vld [vmem:[%s211 + $0x98] sm:$0xff]
        %v1731 = vld [vmem:[%s211 + $0xa0] sm:$0xff]
        %v1732 = vld [vmem:[%s211 + $0xa8] sm:$0xff]
        %v1733 = vld [vmem:[%s211 + $0xb0] sm:$0xff]
        %v1734 = vld [vmem:[%s211 + $0xb8] sm:$0xff]
        %v1735 = vld [vmem:[%s211 + $0xc0] sm:$0xff]
        %v1736 = vld [vmem:[%s211 + $0xc8] sm:$0xff]
        %v1737 = vld [vmem:[%s211 + $0xd0] sm:$0xff]
        %v1738 = vld [vmem:[%s211 + $0xd8] sm:$0xff]
        %v1739 = vld [vmem:[%s211 + $0xe0] sm:$0xff]
        %v1740 = vld [vmem:[%s211 + $0xe8] sm:$0xff]
        %v1741 = vld [vmem:[%s211 + $0xf0] sm:$0xff]
        %v1742 = vld [vmem:[%s211 + $0xf8] sm:$0xff]
        %v1743 = vld [vmem:[%s211 + $0x100] sm:$0xff]
        %v1744 = vld [vmem:[%s211 + $0x108] sm:$0xff]
        %v1745 = vld [vmem:[%s211 + $0x110] sm:$0xff]
        %v1746 = vld [vmem:[%s211 + $0x118] sm:$0xff]
        %v1747 = vld [vmem:[%s211 + $0x120] sm:$0xff]
        %v1748 = vld [vmem:[%s211 + $0x128] sm:$0xff]
        %v1749 = vld [vmem:[%s211 + $0x130] sm:$0xff]
        %v1750 = vld [vmem:[%s211 + $0x138] sm:$0xff]
        %v1751 = vld [vmem:[%s211 + $0x140] sm:$0xff]
        %v1752 = vld [vmem:[%s211 + $0x148] sm:$0xff]
        %v1753 = vld [vmem:[%s211 + $0x150] sm:$0xff]
        %v1754 = vld [vmem:[%s211 + $0x158] sm:$0xff]
        %v1755 = vld [vmem:[%s211 + $0x160] sm:$0xff]
        %v1756 = vld [vmem:[%s211 + $0x168] sm:$0xff]
        %v1757 = vld [vmem:[%s211 + $0x170] sm:$0xff]
        %v1758 = vld [vmem:[%s211 + $0x178] sm:$0xff]
        %v1759 = vld [vmem:[%s211 + $0x180] sm:$0xff]
        %v1760 = vld [vmem:[%s211 + $0x188] sm:$0xff]
        %v1761 = vld [vmem:[%s211 + $0x190] sm:$0xff]
        %v1762 = vld [vmem:[%s211 + $0x198] sm:$0xff]
        %v1763 = vld [vmem:[%s211 + $0x1a0] sm:$0xff]
        %v1764 = vld [vmem:[%s211 + $0x1a8] sm:$0xff]
        %v1765 = vld [vmem:[%s211 + $0x1b0] sm:$0xff]
        %v1766 = vld [vmem:[%s211 + $0x1b8] sm:$0xff]
        %v1767 = vld [vmem:[%s211 + $0x1c0] sm:$0xff]
        %v1768 = vld [vmem:[%s211 + $0x1c8] sm:$0xff]
        %v1769 = vld [vmem:[%s211 + $0x1d0] sm:$0xff]
        %v1770 = vld [vmem:[%s211 + $0x1d8] sm:$0xff]
        %v1771 = vld [vmem:[%s211 + $0x1e0] sm:$0xff]
        %v1772 = vld [vmem:[%s211 + $0x1e8] sm:$0xff]
        %v1773 = vld [vmem:[%s211 + $0x1f0] sm:$0xff]
        %v1774 = vld [vmem:[%s211 + $0x1f8] sm:$0xff]
        %v1775 = vld [vmem:[%s211 + $0x200] sm:$0xff]
        %v1776 = vld [vmem:[%s211 + $0x208] sm:$0xff]
        %v1777 = vld [vmem:[%s211 + $0x210] sm:$0xff]
        %v1778 = vld [vmem:[%s211 + $0x218] sm:$0xff]
        %v1779 = vld [vmem:[%s211 + $0x220] sm:$0xff]
        %v1780 = vld [vmem:[%s211 + $0x228] sm:$0xff]
        %v1781 = vld [vmem:[%s211 + $0x230] sm:$0xff]
        %v1782 = vld [vmem:[%s211 + $0x238] sm:$0xff]
        %v1783 = vld [vmem:[%s211 + $0x240] sm:$0xff]
        %v1784 = vld [vmem:[%s211 + $0x248] sm:$0xff]
        %v1785 = vld [vmem:[%s211 + $0x250] sm:$0xff]
        %v1786 = vld [vmem:[%s211 + $0x258] sm:$0xff]
        %v1787 = vld [vmem:[%s211 + $0x260] sm:$0xff]
        %v1788 = vld [vmem:[%s211 + $0x268] sm:$0xff]
        %v1789 = vld [vmem:[%s211 + $0x270] sm:$0xff]
        %v1790 = vld [vmem:[%s211 + $0x278] sm:$0xff]
        %v1791 = vld [vmem:[%s211 + $0x280] sm:$0xff]
        %v1792 = vld [vmem:[%s211 + $0x288] sm:$0xff]
        %v1793 = vld [vmem:[%s211 + $0x290] sm:$0xff]
        %v1794 = vld [vmem:[%s211 + $0x298] sm:$0xff]
        %v1795 = vld [vmem:[%s211 + $0x2a0] sm:$0xff]
        %v1796 = vld [vmem:[%s211 + $0x2a8] sm:$0xff]
        %v1797 = vld [vmem:[%s211 + $0x2b0] sm:$0xff]
        %v1798 = vld [vmem:[%s211 + $0x2b8] sm:$0xff]
        %v1799 = vld [vmem:[%s211 + $0x2c0] sm:$0xff]
        %v1800 = vld [vmem:[%s211 + $0x2c8] sm:$0xff]
        %v1801 = vld [vmem:[%s211 + $0x2d0] sm:$0xff]
        %v1802 = vld [vmem:[%s211 + $0x2d8] sm:$0xff]
        %v1803 = vld [vmem:[%s211 + $0x2e0] sm:$0xff]
        %v1804 = vld [vmem:[%s211 + $0x2e8] sm:$0xff]
        %v1805 = vld [vmem:[%s211 + $0x2f0] sm:$0xff]
        %v1806 = vld [vmem:[%s211 + $0x2f8] sm:$0xff]
        %v1807 = vld [vmem:[%s211 + $0x300] sm:$0xff]
        %v1808 = vld [vmem:[%s211 + $0x308] sm:$0xff]
        %v1809 = vld [vmem:[%s211 + $0x310] sm:$0xff]
        %v1810 = vld [vmem:[%s211 + $0x318] sm:$0xff]
        %v1811 = vld [vmem:[%s211 + $0x320] sm:$0xff]
        %v1812 = vld [vmem:[%s211 + $0x328] sm:$0xff]
        %v1813 = vld [vmem:[%s211 + $0x330] sm:$0xff]
        %v1814 = vld [vmem:[%s211 + $0x338] sm:$0xff]
        %v1815 = vld [vmem:[%s211 + $0x340] sm:$0xff]
        %v1816 = vld [vmem:[%s211 + $0x348] sm:$0xff]
        %v1817 = vld [vmem:[%s211 + $0x350] sm:$0xff]
        %v1818 = vld [vmem:[%s211 + $0x358] sm:$0xff]
        %v1819 = vld [vmem:[%s211 + $0x360] sm:$0xff]
        %v1820 = vld [vmem:[%s211 + $0x368] sm:$0xff]
        %v1821 = vld [vmem:[%s211 + $0x370] sm:$0xff]
        %v1822 = vld [vmem:[%s211 + $0x378] sm:$0xff]
        %v1823 = vld [vmem:[%s211 + $0x380] sm:$0xff]
        %v1824 = vld [vmem:[%s211 + $0x388] sm:$0xff]
        %v1825 = vld [vmem:[%s211 + $0x390] sm:$0xff]
        %v1826 = vld [vmem:[%s211 + $0x398] sm:$0xff]
        %v1827 = vld [vmem:[%s211 + $0x3a0] sm:$0xff]
        %v1828 = vld [vmem:[%s211 + $0x3a8] sm:$0xff]
        %v1829 = vld [vmem:[%s211 + $0x3b0] sm:$0xff]
        %v1830 = vld [vmem:[%s211 + $0x3b8] sm:$0xff]
        %v1831 = vld [vmem:[%s211 + $0x3c0] sm:$0xff]
        %v1832 = vld [vmem:[%s211 + $0x3c8] sm:$0xff]
        %v1833 = vld [vmem:[%s211 + $0x3d0] sm:$0xff]
        %v1834 = vld [vmem:[%s211 + $0x3d8] sm:$0xff]
        %v1835 = vld [vmem:[%s211 + $0x3e0] sm:$0xff]
        %v1836 = vld [vmem:[%s211 + $0x3e8] sm:$0xff]
        %v1837 = vld [vmem:[%s211 + $0x3f0] sm:$0xff]
        %v1838 = vld [vmem:[%s211 + $0x3f8] sm:$0xff]
        %v1839 = vld [vmem:[#allocation3] sm:$0xff]
        %v1840 = vld [vmem:[#allocation3 + $0x8] sm:$0xff]
        %v1841 = vld [vmem:[#allocation3 + $0x10] sm:$0xff]
        %v1842 = vld [vmem:[#allocation3 + $0x18] sm:$0xff]
        %v1843 = vld [vmem:[#allocation3 + $0x20] sm:$0xff]
        %v1844 = vld [vmem:[#allocation3 + $0x28] sm:$0xff]
        %v1845 = vld [vmem:[#allocation3 + $0x30] sm:$0xff]
        %v1846 = vld [vmem:[#allocation3 + $0x38] sm:$0xff]
        %v1847 = vld [vmem:[#allocation3 + $0x40] sm:$0xff]
        %v1848 = vld [vmem:[#allocation3 + $0x48] sm:$0xff]
        %v1849 = vld [vmem:[#allocation3 + $0x50] sm:$0xff]
        %v1850 = vld [vmem:[#allocation3 + $0x58] sm:$0xff]
        %v1851 = vld [vmem:[#allocation3 + $0x60] sm:$0xff]
        %v1852 = vld [vmem:[#allocation3 + $0x68] sm:$0xff]
        %v1853 = vld [vmem:[#allocation3 + $0x70] sm:$0xff]
        %v1854 = vld [vmem:[#allocation3 + $0x78] sm:$0xff]
        %v1855 = vld [vmem:[#allocation3 + $0x80] sm:$0xff]
        %v1856 = vld [vmem:[#allocation3 + $0x88] sm:$0xff]
        %v1857 = vld [vmem:[#allocation3 + $0x90] sm:$0xff]
        %v1858 = vld [vmem:[#allocation3 + $0x98] sm:$0xff]
        %v1859 = vld [vmem:[#allocation3 + $0xa0] sm:$0xff]
        %v1860 = vld [vmem:[#allocation3 + $0xa8] sm:$0xff]
        %v1861 = vld [vmem:[#allocation3 + $0xb0] sm:$0xff]
        %v1862 = vld [vmem:[#allocation3 + $0xb8] sm:$0xff]
        %v1863 = vld [vmem:[#allocation3 + $0xc0] sm:$0xff]
        %v1864 = vld [vmem:[#allocation3 + $0xc8] sm:$0xff]
        %v1865 = vld [vmem:[#allocation3 + $0xd0] sm:$0xff]
        %v1866 = vld [vmem:[#allocation3 + $0xd8] sm:$0xff]
        %v1867 = vld [vmem:[#allocation3 + $0xe0] sm:$0xff]
        %v1868 = vld [vmem:[#allocation3 + $0xe8] sm:$0xff]
        %v1869 = vld [vmem:[#allocation3 + $0xf0] sm:$0xff]
        %v1870 = vld [vmem:[#allocation3 + $0xf8] sm:$0xff]
        %v1871 = vld [vmem:[#allocation3 + $0x100] sm:$0xff]
        %v1872 = vld [vmem:[#allocation3 + $0x108] sm:$0xff]
        %v1873 = vld [vmem:[#allocation3 + $0x110] sm:$0xff]
        %v1874 = vld [vmem:[#allocation3 + $0x118] sm:$0xff]
        %v1875 = vld [vmem:[#allocation3 + $0x120] sm:$0xff]
        %v1876 = vld [vmem:[#allocation3 + $0x128] sm:$0xff]
        %v1877 = vld [vmem:[#allocation3 + $0x130] sm:$0xff]
        %v1878 = vld [vmem:[#allocation3 + $0x138] sm:$0xff]
        %v1879 = vld [vmem:[#allocation3 + $0x140] sm:$0xff]
        %v1880 = vld [vmem:[#allocation3 + $0x148] sm:$0xff]
        %v1881 = vld [vmem:[#allocation3 + $0x150] sm:$0xff]
        %v1882 = vld [vmem:[#allocation3 + $0x158] sm:$0xff]
        %v1883 = vld [vmem:[#allocation3 + $0x160] sm:$0xff]
        %v1884 = vld [vmem:[#allocation3 + $0x168] sm:$0xff]
        %v1885 = vld [vmem:[#allocation3 + $0x170] sm:$0xff]
        %v1886 = vld [vmem:[#allocation3 + $0x178] sm:$0xff]
        %v1887 = vld [vmem:[#allocation3 + $0x180] sm:$0xff]
        %v1888 = vld [vmem:[#allocation3 + $0x188] sm:$0xff]
        %v1889 = vld [vmem:[#allocation3 + $0x190] sm:$0xff]
        %v1890 = vld [vmem:[#allocation3 + $0x198] sm:$0xff]
        %v1891 = vld [vmem:[#allocation3 + $0x1a0] sm:$0xff]
        %v1892 = vld [vmem:[#allocation3 + $0x1a8] sm:$0xff]
        %v1893 = vld [vmem:[#allocation3 + $0x1b0] sm:$0xff]
        %v1894 = vld [vmem:[#allocation3 + $0x1b8] sm:$0xff]
        %v1895 = vld [vmem:[#allocation3 + $0x1c0] sm:$0xff]
        %v1896 = vld [vmem:[#allocation3 + $0x1c8] sm:$0xff]
        %v1897 = vld [vmem:[#allocation3 + $0x1d0] sm:$0xff]
        %v1898 = vld [vmem:[#allocation3 + $0x1d8] sm:$0xff]
        %v1899 = vld [vmem:[#allocation3 + $0x1e0] sm:$0xff]
        %v1900 = vld [vmem:[#allocation3 + $0x1e8] sm:$0xff]
        %v1901 = vld [vmem:[#allocation3 + $0x1f0] sm:$0xff]
        %v1902 = vld [vmem:[#allocation3 + $0x1f8] sm:$0xff]
        %1903 = vmatprep.subr.mxu0 0.0
        %1904 = vmatpush1.msra.mxu0 %v1839
        %1905 = vmatprep.subr.mxu0 0.0
        %1906 = vmatpush1.msra.mxu0 %v1840
        %1907 = vmatprep.subr.mxu0 0.0
        %1908 = vmatpush1.msra.mxu0 %v1841
        %1909 = vmatprep.subr.mxu0 0.0
        %1910 = vmatpush1.msra.mxu0 %v1842
        %1911 = vmatprep.subr.mxu0 0.0
        %1912 = vmatpush1.msra.mxu0 %v1843
        %1913 = vmatprep.subr.mxu0 0.0
        %1914 = vmatpush1.msra.mxu0 %v1844
        %1915 = vmatprep.subr.mxu0 0.0
        %1916 = vmatpush1.msra.mxu0 %v1845
        %1917 = vmatprep.subr.mxu0 0.0
        %1918 = vmatpush1.msra.mxu0 %v1846
        %1919 = vmatprep.subr.mxu0 0.0
        %1920 = vmatpush1.msra.mxu0 %v1847
        %1921 = vmatprep.subr.mxu0 0.0
        %1922 = vmatpush1.msra.mxu0 %v1848
        %1923 = vmatprep.subr.mxu0 0.0
        %1924 = vmatpush1.msra.mxu0 %v1849
        %1925 = vmatprep.subr.mxu0 0.0
        %1926 = vmatpush1.msra.mxu0 %v1850
        %1927 = vmatprep.subr.mxu0 0.0
        %1928 = vmatpush1.msra.mxu0 %v1851
        %1929 = vmatprep.subr.mxu0 0.0
        %1930 = vmatpush1.msra.mxu0 %v1852
        %1931 = vmatprep.subr.mxu0 0.0
        %1932 = vmatpush1.msra.mxu0 %v1853
        %1933 = vmatprep.subr.mxu0 0.0
        %1934 = vmatpush1.msra.mxu0 %v1854
        %1935 = vmatprep.subr.mxu0 0.0
        %1936 = vmatpush1.msra.mxu0 %v1855
        %1937 = vmatprep.subr.mxu0 0.0
        %1938 = vmatpush1.msra.mxu0 %v1856
        %1939 = vmatprep.subr.mxu0 0.0
        %1940 = vmatpush1.msra.mxu0 %v1857
        %1941 = vmatprep.subr.mxu0 0.0
        %1942 = vmatpush1.msra.mxu0 %v1858
        %1943 = vmatprep.subr.mxu0 0.0
        %1944 = vmatpush1.msra.mxu0 %v1859
        %1945 = vmatprep.subr.mxu0 0.0
        %1946 = vmatpush1.msra.mxu0 %v1860
        %1947 = vmatprep.subr.mxu0 0.0
        %1948 = vmatpush1.msra.mxu0 %v1861
        %1949 = vmatprep.subr.mxu0 0.0
        %1950 = vmatpush1.msra.mxu0 %v1862
        %1951 = vmatprep.subr.mxu0 0.0
        %1952 = vmatpush1.msra.mxu0 %v1863
        %1953 = vmatprep.subr.mxu0 0.0
        %1954 = vmatpush1.msra.mxu0 %v1864
        %1955 = vmatprep.subr.mxu0 0.0
        %1956 = vmatpush1.msra.mxu0 %v1865
        %1957 = vmatprep.subr.mxu0 0.0
        %1958 = vmatpush1.msra.mxu0 %v1866
        %1959 = vmatprep.subr.mxu0 0.0
        %1960 = vmatpush1.msra.mxu0 %v1867
        %1961 = vmatprep.subr.mxu0 0.0
        %1962 = vmatpush1.msra.mxu0 %v1868
        %1963 = vmatprep.subr.mxu0 0.0
        %1964 = vmatpush1.msra.mxu0 %v1869
        %1965 = vmatprep.subr.mxu0 0.0
        %1966 = vmatpush1.msra.mxu0 %v1870
        %1967 = vmatprep.mubr.f32.mxu0 %v1712
        %1968 = vmatmul.mubr.f32.gmra.mrb[0].mxu0 %v1711
        %v1969 = vpop.f32.mrb[0].mxu0
        %v1970 = vadd.f32 0.0, %v1969
        %v1971 = vpop.f32.mrb[0].mxu0
        %1972 = vmatprep.mubr.f32.mxu0 %v1716
        %1973 = vmatmul.mubr.f32.gmra.mrb[0].mxu0 %v1715
        %v1974 = vpop.f32.mrb[0].mxu0
        %v1975 = vadd.f32 0.0, %v1974
        %v1976 = vpop.f32.mrb[0].mxu0
        %1977 = vmatprep.mubr.f32.mxu0 %v1720
        %1978 = vmatmul.mubr.f32.gmra.mrb[0].mxu0 %v1719
        %v1979 = vpop.f32.mrb[0].mxu0
        %v1980 = vadd.f32 0.0, %v1979
        %v1981 = vpop.f32.mrb[0].mxu0
        %1982 = vmatprep.mubr.f32.mxu0 %v1724
        %1983 = vmatmul.mubr.f32.gmra.mrb[0].mxu0 %v1723
        %v1984 = vpop.f32.mrb[0].mxu0
        %v1985 = vadd.f32 0.0, %v1984
        %v1986 = vpop.f32.mrb[0].mxu0
        %1987 = vmatprep.mubr.f32.mxu0 %v1728
        %1988 = vmatmul.mubr.f32.gmra.mrb[0].mxu0 %v1727
        %v1989 = vpop.f32.mrb[0].mxu0
        %v1990 = vadd.f32 0.0, %v1989
        %v1991 = vpop.f32.mrb[0].mxu0
        %1992 = vmatprep.mubr.f32.mxu0 %v1732
        %1993 = vmatmul.mubr.f32.gmra.mrb[0].mxu0 %v1731
        %v1994 = vpop.f32.mrb[0].mxu0
        %v1995 = vadd.f32 0.0, %v1994
        %v1996 = vpop.f32.mrb[0].mxu0
        %1997 = vmatprep.mubr.f32.mxu0 %v1736
        %1998 = vmatmul.mubr.f32.gmra.mrb[0].mxu0 %v1735
        %v1999 = vpop.f32.mrb[0].mxu0
        %v2000 = vadd.f32 0.0, %v1999
        %v2001 = vpop.f32.mrb[0].mxu0
        %2002 = vmatprep.mubr.f32.mxu0 %v1740
        %2003 = vmatmul.mubr.f32.gmra.mrb[0].mxu0 %v1739
        %v2004 = vpop.f32.mrb[0].mxu0
        %v2005 = vadd.f32 0.0, %v2004
        %v2006 = vpop.f32.mrb[0].mxu0
        %2007 = vmatprep.mubr.f32.mxu0 %v1744
        %2008 = vmatmul.mubr.f32.gmra.mrb[0].mxu0 %v1743
        %v2009 = vpop.f32.mrb[0].mxu0
        %v2010 = vadd.f32 0.0, %v2009
        %v2011 = vpop.f32.mrb[0].mxu0
        %2012 = vmatprep.mubr.f32.mxu0 %v1748
        %2013 = vmatmul.mubr.f32.gmra.mrb[0].mxu0 %v1747
        %v2014 = vpop.f32.mrb[0].mxu0
        %v2015 = vadd.f32 0.0, %v2014
        %v2016 = vpop.f32.mrb[0].mxu0
        %2017 = vmatprep.mubr.f32.mxu0 %v1752
        %2018 = vmatmul.mubr.f32.gmra.mrb[0].mxu0 %v1751
        %v2019 = vpop.f32.mrb[0].mxu0
        %v2020 = vadd.f32 0.0, %v2019
        %v2021 = vpop.f32.mrb[0].mxu0
        %2022 = vmatprep.mubr.f32.mxu0 %v1756
        %2023 = vmatmul.mubr.f32.gmra.mrb[0].mxu0 %v1755
        %v2024 = vpop.f32.mrb[0].mxu0
        %v2025 = vadd.f32 0.0, %v2024
        %v2026 = vpop.f32.mrb[0].mxu0
        %2027 = vmatprep.mubr.f32.mxu0 %v1760
        %2028 = vmatmul.mubr.f32.gmra.mrb[0].mxu0 %v1759
        %v2029 = vpop.f32.mrb[0].mxu0
        %v2030 = vadd.f32 0.0, %v2029
        %v2031 = vpop.f32.mrb[0].mxu0
        %2032 = vmatprep.mubr.f32.mxu0 %v1764
        %2033 = vmatmul.mubr.f32.gmra.mrb[0].mxu0 %v1763
        %v2034 = vpop.f32.mrb[0].mxu0
        %v2035 = vadd.f32 0.0, %v2034
        %v2036 = vpop.f32.mrb[0].mxu0
        %2037 = vmatprep.mubr.f32.mxu0 %v1768
        %2038 = vmatmul.mubr.f32.gmra.mrb[0].mxu0 %v1767
        %v2039 = vpop.f32.mrb[0].mxu0
        %v2040 = vadd.f32 0.0, %v2039
        %v2041 = vpop.f32.mrb[0].mxu0
        %2042 = vmatprep.mubr.f32.mxu0 %v1772
        %2043 = vmatmul.mubr.f32.gmra.mrb[0].mxu0 %v1771
        %v2044 = vpop.f32.mrb[0].mxu0
        %v2045 = vadd.f32 0.0, %v2044
        %v2046 = vpop.f32.mrb[0].mxu0
        %2047 = vmatprep.mubr.f32.mxu0 %v1776
        %2048 = vmatmul.mubr.f32.gmra.mrb[0].mxu0 %v1775
        %v2049 = vpop.f32.mrb[0].mxu0
        %v2050 = vadd.f32 0.0, %v2049
        %v2051 = vpop.f32.mrb[0].mxu0
        %2052 = vmatprep.mubr.f32.mxu0 %v1780
        %2053 = vmatmul.mubr.f32.gmra.mrb[0].mxu0 %v1779
        %v2054 = vpop.f32.mrb[0].mxu0
        %v2055 = vadd.f32 0.0, %v2054
        %v2056 = vpop.f32.mrb[0].mxu0
        %2057 = vmatprep.mubr.f32.mxu0 %v1784
        %2058 = vmatmul.mubr.f32.gmra.mrb[0].mxu0 %v1783
        %v2059 = vpop.f32.mrb[0].mxu0
        %v2060 = vadd.f32 0.0, %v2059
        %v2061 = vpop.f32.mrb[0].mxu0
        %2062 = vmatprep.mubr.f32.mxu0 %v1788
        %2063 = vmatmul.mubr.f32.gmra.mrb[0].mxu0 %v1787
        %v2064 = vpop.f32.mrb[0].mxu0
        %v2065 = vadd.f32 0.0, %v2064
        %v2066 = vpop.f32.mrb[0].mxu0
        %2067 = vmatprep.mubr.f32.mxu0 %v1792
        %2068 = vmatmul.mubr.f32.gmra.mrb[0].mxu0 %v1791
        %v2069 = vpop.f32.mrb[0].mxu0
        %v2070 = vadd.f32 0.0, %v2069
        %v2071 = vpop.f32.mrb[0].mxu0
        %2072 = vmatprep.mubr.f32.mxu0 %v1796
        %2073 = vmatmul.mubr.f32.gmra.mrb[0].mxu0 %v1795
        %v2074 = vpop.f32.mrb[0].mxu0
        %v2075 = vadd.f32 0.0, %v2074
        %v2076 = vpop.f32.mrb[0].mxu0
        %2077 = vmatprep.mubr.f32.mxu0 %v1800
        %2078 = vmatmul.mubr.f32.gmra.mrb[0].mxu0 %v1799
        %v2079 = vpop.f32.mrb[0].mxu0
        %v2080 = vadd.f32 0.0, %v2079
        %v2081 = vpop.f32.mrb[0].mxu0
        %2082 = vmatprep.mubr.f32.mxu0 %v1804
        %2083 = vmatmul.mubr.f32.gmra.mrb[0].mxu0 %v1803
        %v2084 = vpop.f32.mrb[0].mxu0
        %v2085 = vadd.f32 0.0, %v2084
        %v2086 = vpop.f32.mrb[0].mxu0
        %2087 = vmatprep.mubr.f32.mxu0 %v1808
        %2088 = vmatmul.mubr.f32.gmra.mrb[0].mxu0 %v1807
        %v2089 = vpop.f32.mrb[0].mxu0
        %v2090 = vadd.f32 0.0, %v2089
        %v2091 = vpop.f32.mrb[0].mxu0
        %2092 = vmatprep.mubr.f32.mxu0 %v1812
        %2093 = vmatmul.mubr.f32.gmra.mrb[0].mxu0 %v1811
        %v2094 = vpop.f32.mrb[0].mxu0
        %v2095 = vadd.f32 0.0, %v2094
        %v2096 = vpop.f32.mrb[0].mxu0
        %2097 = vmatprep.mubr.f32.mxu0 %v1816
        %2098 = vmatmul.mubr.f32.gmra.mrb[0].mxu0 %v1815
        %v2099 = vpop.f32.mrb[0].mxu0
        %v2100 = vadd.f32 0.0, %v2099
        %v2101 = vpop.f32.mrb[0].mxu0
        %2102 = vmatprep.mubr.f32.mxu0 %v1820
        %2103 = vmatmul.mubr.f32.gmra.mrb[0].mxu0 %v1819
        %v2104 = vpop.f32.mrb[0].mxu0
        %v2105 = vadd.f32 0.0, %v2104
        %v2106 = vpop.f32.mrb[0].mxu0
        %2107 = vmatprep.mubr.f32.mxu0 %v1824
        %2108 = vmatmul.mubr.f32.gmra.mrb[0].mxu0 %v1823
        %v2109 = vpop.f32.mrb[0].mxu0
        %v2110 = vadd.f32 0.0, %v2109
        %v2111 = vpop.f32.mrb[0].mxu0
        %2112 = vmatprep.mubr.f32.mxu0 %v1828
        %2113 = vmatmul.mubr.f32.gmra.mrb[0].mxu0 %v1827
        %v2114 = vpop.f32.mrb[0].mxu0
        %v2115 = vadd.f32 0.0, %v2114
        %v2116 = vpop.f32.mrb[0].mxu0
        %2117 = vmatprep.mubr.f32.mxu0 %v1832
        %2118 = vmatmul.mubr.f32.gmra.mrb[0].mxu0 %v1831
        %v2119 = vpop.f32.mrb[0].mxu0
        %v2120 = vadd.f32 0.0, %v2119
        %v2121 = vpop.f32.mrb[0].mxu0
        %2122 = vmatprep.mubr.f32.mxu0 %v1836
        %2123 = vmatmul.mubr.f32.gmra.mrb[0].mxu0 %v1835
        %v2124 = vpop.f32.mrb[0].mxu0
        %v2125 = vadd.f32 0.0, %v2124
        %v2126 = vpop.f32.mrb[0].mxu0
        %2127 = vdwg.mxu0
        %2128 = vmatprep.subr.mxu0 0.0
        %2129 = vmatpush1.msra.mxu0 %v1871
        %2130 = vmatprep.subr.mxu0 0.0
        %2131 = vmatpush1.msra.mxu0 %v1872
        %2132 = vmatprep.subr.mxu0 0.0
        %2133 = vmatpush1.msra.mxu0 %v1873
        %2134 = vmatprep.subr.mxu0 0.0
        %2135 = vmatpush1.msra.mxu0 %v1874
        %2136 = vmatprep.subr.mxu0 0.0
        %2137 = vmatpush1.msra.mxu0 %v1875
        %2138 = vmatprep.subr.mxu0 0.0
        %2139 = vmatpush1.msra.mxu0 %v1876
        %2140 = vmatprep.subr.mxu0 0.0
        %2141 = vmatpush1.msra.mxu0 %v1877
        %2142 = vmatprep.subr.mxu0 0.0
        %2143 = vmatpush1.msra.mxu0 %v1878
        %2144 = vmatprep.subr.mxu0 0.0
        %2145 = vmatpush1.msra.mxu0 %v1879
        %2146 = vmatprep.subr.mxu0 0.0
        %2147 = vmatpush1.msra.mxu0 %v1880
        %2148 = vmatprep.subr.mxu0 0.0
        %2149 = vmatpush1.msra.mxu0 %v1881
        %2150 = vmatprep.subr.mxu0 0.0
        %2151 = vmatpush1.msra.mxu0 %v1882
        %2152 = vmatprep.subr.mxu0 0.0
        %2153 = vmatpush1.msra.mxu0 %v1883
        %2154 = vmatprep.subr.mxu0 0.0
        %2155 = vmatpush1.msra.mxu0 %v1884
        %2156 = vmatprep.subr.mxu0 0.0
        %2157 = vmatpush1.msra.mxu0 %v1885
        %2158 = vmatprep.subr.mxu0 0.0
        %2159 = vmatpush1.msra.mxu0 %v1886
        %2160 = vmatprep.subr.mxu0 0.0
        %2161 = vmatpush1.msra.mxu0 %v1887
        %2162 = vmatprep.subr.mxu0 0.0
        %2163 = vmatpush1.msra.mxu0 %v1888
        %2164 = vmatprep.subr.mxu0 0.0
        %2165 = vmatpush1.msra.mxu0 %v1889
        %2166 = vmatprep.subr.mxu0 0.0
        %2167 = vmatpush1.msra.mxu0 %v1890
        %2168 = vmatprep.subr.mxu0 0.0
        %2169 = vmatpush1.msra.mxu0 %v1891
        %2170 = vmatprep.subr.mxu0 0.0
        %2171 = vmatpush1.msra.mxu0 %v1892
        %2172 = vmatprep.subr.mxu0 0.0
        %2173 = vmatpush1.msra.mxu0 %v1893
        %2174 = vmatprep.subr.mxu0 0.0
        %2175 = vmatpush1.msra.mxu0 %v1894
        %2176 = vmatprep.subr.mxu0 0.0
        %2177 = vmatpush1.msra.mxu0 %v1895
        %2178 = vmatprep.subr.mxu0 0.0
        %2179 = vmatpush1.msra.mxu0 %v1896
        %2180 = vmatprep.subr.mxu0 0.0
        %2181 = vmatpush1.msra.mxu0 %v1897
        %2182 = vmatprep.subr.mxu0 0.0
        %2183 = vmatpush1.msra.mxu0 %v1898
        %2184 = vmatprep.subr.mxu0 0.0
        %2185 = vmatpush1.msra.mxu0 %v1899
        %2186 = vmatprep.subr.mxu0 0.0
        %2187 = vmatpush1.msra.mxu0 %v1900
        %2188 = vmatprep.subr.mxu0 0.0
        %2189 = vmatpush1.msra.mxu0 %v1901
        %2190 = vmatprep.subr.mxu0 0.0
        %2191 = vmatpush1.msra.mxu0 %v1902
        %2192 = vmatprep.mubr.f32.mxu0 %v1714
        %2193 = vmatmul.mubr.f32.gmra.mrb[0].mxu0 %v1713
        %v2194 = vpop.f32.mrb[0].mxu0
        %v2195 = vadd.f32 %v1970, %v2194
        %v2196 = vpop.f32.mrb[0].mxu0
        %2197 = vmatprep.mubr.f32.mxu0 %v1718
        %2198 = vmatmul.mubr.f32.gmra.mrb[0].mxu0 %v1717
        %v2199 = vpop.f32.mrb[0].mxu0
        %v2200 = vadd.f32 %v1975, %v2199
        %v2201 = vpop.f32.mrb[0].mxu0
        %2202 = vmatprep.mubr.f32.mxu0 %v1722
        %2203 = vmatmul.mubr.f32.gmra.mrb[0].mxu0 %v1721
        %v2204 = vpop.f32.mrb[0].mxu0
        %v2205 = vadd.f32 %v1980, %v2204
        %v2206 = vpop.f32.mrb[0].mxu0
        %2207 = vmatprep.mubr.f32.mxu0 %v1726
        %2208 = vmatmul.mubr.f32.gmra.mrb[0].mxu0 %v1725
        %v2209 = vpop.f32.mrb[0].mxu0
        %v2210 = vadd.f32 %v1985, %v2209
        %v2211 = vpop.f32.mrb[0].mxu0
        %2212 = vmatprep.mubr.f32.mxu0 %v1730
        %2213 = vmatmul.mubr.f32.gmra.mrb[0].mxu0 %v1729
        %v2214 = vpop.f32.mrb[0].mxu0
        %v2215 = vadd.f32 %v1990, %v2214
        %v2216 = vpop.f32.mrb[0].mxu0
        %2217 = vmatprep.mubr.f32.mxu0 %v1734
        %2218 = vmatmul.mubr.f32.gmra.mrb[0].mxu0 %v1733
        %v2219 = vpop.f32.mrb[0].mxu0
        %v2220 = vadd.f32 %v1995, %v2219
        %v2221 = vpop.f32.mrb[0].mxu0
        %2222 = vmatprep.mubr.f32.mxu0 %v1738
        %2223 = vmatmul.mubr.f32.gmra.mrb[0].mxu0 %v1737
        %v2224 = vpop.f32.mrb[0].mxu0
        %v2225 = vadd.f32 %v2000, %v2224
        %v2226 = vpop.f32.mrb[0].mxu0
        %2227 = vmatprep.mubr.f32.mxu0 %v1742
        %2228 = vmatmul.mubr.f32.gmra.mrb[0].mxu0 %v1741
        %v2229 = vpop.f32.mrb[0].mxu0
        %v2230 = vadd.f32 %v2005, %v2229
        %v2231 = vpop.f32.mrb[0].mxu0
        %2232 = vmatprep.mubr.f32.mxu0 %v1746
        %2233 = vmatmul.mubr.f32.gmra.mrb[0].mxu0 %v1745
        %v2234 = vpop.f32.mrb[0].mxu0
        %v2235 = vadd.f32 %v2010, %v2234
        %v2236 = vpop.f32.mrb[0].mxu0
        %2237 = vmatprep.mubr.f32.mxu0 %v1750
        %2238 = vmatmul.mubr.f32.gmra.mrb[0].mxu0 %v1749
        %v2239 = vpop.f32.mrb[0].mxu0
        %v2240 = vadd.f32 %v2015, %v2239
        %v2241 = vpop.f32.mrb[0].mxu0
        %2242 = vmatprep.mubr.f32.mxu0 %v1754
        %2243 = vmatmul.mubr.f32.gmra.mrb[0].mxu0 %v1753
        %v2244 = vpop.f32.mrb[0].mxu0
        %v2245 = vadd.f32 %v2020, %v2244
        %v2246 = vpop.f32.mrb[0].mxu0
        %2247 = vmatprep.mubr.f32.mxu0 %v1758
        %2248 = vmatmul.mubr.f32.gmra.mrb[0].mxu0 %v1757
        %v2249 = vpop.f32.mrb[0].mxu0
        %v2250 = vadd.f32 %v2025, %v2249
        %v2251 = vpop.f32.mrb[0].mxu0
        %2252 = vmatprep.mubr.f32.mxu0 %v1762
        %2253 = vmatmul.mubr.f32.gmra.mrb[0].mxu0 %v1761
        %v2254 = vpop.f32.mrb[0].mxu0
        %v2255 = vadd.f32 %v2030, %v2254
        %v2256 = vpop.f32.mrb[0].mxu0
        %2257 = vmatprep.mubr.f32.mxu0 %v1766
        %2258 = vmatmul.mubr.f32.gmra.mrb[0].mxu0 %v1765
        %v2259 = vpop.f32.mrb[0].mxu0
        %v2260 = vadd.f32 %v2035, %v2259
        %v2261 = vpop.f32.mrb[0].mxu0
        %2262 = vmatprep.mubr.f32.mxu0 %v1770
        %2263 = vmatmul.mubr.f32.gmra.mrb[0].mxu0 %v1769
        %v2264 = vpop.f32.mrb[0].mxu0
        %v2265 = vadd.f32 %v2040, %v2264
        %v2266 = vpop.f32.mrb[0].mxu0
        %2267 = vmatprep.mubr.f32.mxu0 %v1774
        %2268 = vmatmul.mubr.f32.gmra.mrb[0].mxu0 %v1773
        %v2269 = vpop.f32.mrb[0].mxu0
        %v2270 = vadd.f32 %v2045, %v2269
        %v2271 = vpop.f32.mrb[0].mxu0
        %2272 = vmatprep.mubr.f32.mxu0 %v1778
        %2273 = vmatmul.mubr.f32.gmra.mrb[0].mxu0 %v1777
        %v2274 = vpop.f32.mrb[0].mxu0
        %v2275 = vadd.f32 %v2050, %v2274
        %v2276 = vpop.f32.mrb[0].mxu0
        %2277 = vmatprep.mubr.f32.mxu0 %v1782
        %2278 = vmatmul.mubr.f32.gmra.mrb[0].mxu0 %v1781
        %v2279 = vpop.f32.mrb[0].mxu0
        %v2280 = vadd.f32 %v2055, %v2279
        %v2281 = vpop.f32.mrb[0].mxu0
        %2282 = vmatprep.mubr.f32.mxu0 %v1786
        %2283 = vmatmul.mubr.f32.gmra.mrb[0].mxu0 %v1785
        %v2284 = vpop.f32.mrb[0].mxu0
        %v2285 = vadd.f32 %v2060, %v2284
        %v2286 = vpop.f32.mrb[0].mxu0
        %2287 = vmatprep.mubr.f32.mxu0 %v1790
        %2288 = vmatmul.mubr.f32.gmra.mrb[0].mxu0 %v1789
        %v2289 = vpop.f32.mrb[0].mxu0
        %v2290 = vadd.f32 %v2065, %v2289
        %v2291 = vpop.f32.mrb[0].mxu0
        %2292 = vmatprep.mubr.f32.mxu0 %v1794
        %2293 = vmatmul.mubr.f32.gmra.mrb[0].mxu0 %v1793
        %v2294 = vpop.f32.mrb[0].mxu0
        %v2295 = vadd.f32 %v2070, %v2294
        %v2296 = vpop.f32.mrb[0].mxu0
        %2297 = vmatprep.mubr.f32.mxu0 %v1798
        %2298 = vmatmul.mubr.f32.gmra.mrb[0].mxu0 %v1797
        %v2299 = vpop.f32.mrb[0].mxu0
        %v2300 = vadd.f32 %v2075, %v2299
        %v2301 = vpop.f32.mrb[0].mxu0
        %2302 = vmatprep.mubr.f32.mxu0 %v1802
        %2303 = vmatmul.mubr.f32.gmra.mrb[0].mxu0 %v1801
        %v2304 = vpop.f32.mrb[0].mxu0
        %v2305 = vadd.f32 %v2080, %v2304
        %v2306 = vpop.f32.mrb[0].mxu0
        %2307 = vmatprep.mubr.f32.mxu0 %v1806
        %2308 = vmatmul.mubr.f32.gmra.mrb[0].mxu0 %v1805
        %v2309 = vpop.f32.mrb[0].mxu0
        %v2310 = vadd.f32 %v2085, %v2309
        %v2311 = vpop.f32.mrb[0].mxu0
        %2312 = vmatprep.mubr.f32.mxu0 %v1810
        %2313 = vmatmul.mubr.f32.gmra.mrb[0].mxu0 %v1809
        %v2314 = vpop.f32.mrb[0].mxu0
        %v2315 = vadd.f32 %v2090, %v2314
        %v2316 = vpop.f32.mrb[0].mxu0
        %2317 = vmatprep.mubr.f32.mxu0 %v1814
        %2318 = vmatmul.mubr.f32.gmra.mrb[0].mxu0 %v1813
        %v2319 = vpop.f32.mrb[0].mxu0
        %v2320 = vadd.f32 %v2095, %v2319
        %v2321 = vpop.f32.mrb[0].mxu0
        %2322 = vmatprep.mubr.f32.mxu0 %v1818
        %2323 = vmatmul.mubr.f32.gmra.mrb[0].mxu0 %v1817
        %v2324 = vpop.f32.mrb[0].mxu0
        %v2325 = vadd.f32 %v2100, %v2324
        %v2326 = vpop.f32.mrb[0].mxu0
        %2327 = vmatprep.mubr.f32.mxu0 %v1822
        %2328 = vmatmul.mubr.f32.gmra.mrb[0].mxu0 %v1821
        %v2329 = vpop.f32.mrb[0].mxu0
        %v2330 = vadd.f32 %v2105, %v2329
        %v2331 = vpop.f32.mrb[0].mxu0
        %2332 = vmatprep.mubr.f32.mxu0 %v1826
        %2333 = vmatmul.mubr.f32.gmra.mrb[0].mxu0 %v1825
        %v2334 = vpop.f32.mrb[0].mxu0
        %v2335 = vadd.f32 %v2110, %v2334
        %v2336 = vpop.f32.mrb[0].mxu0
        %2337 = vmatprep.mubr.f32.mxu0 %v1830
        %2338 = vmatmul.mubr.f32.gmra.mrb[0].mxu0 %v1829
        %v2339 = vpop.f32.mrb[0].mxu0
        %v2340 = vadd.f32 %v2115, %v2339
        %v2341 = vpop.f32.mrb[0].mxu0
        %2342 = vmatprep.mubr.f32.mxu0 %v1834
        %2343 = vmatmul.mubr.f32.gmra.mrb[0].mxu0 %v1833
        %v2344 = vpop.f32.mrb[0].mxu0
        %v2345 = vadd.f32 %v2120, %v2344
        %v2346 = vpop.f32.mrb[0].mxu0
        %2347 = vmatprep.mubr.f32.mxu0 %v1838
        %2348 = vmatmul.mubr.f32.gmra.mrb[0].mxu0 %v1837
        %v2349 = vpop.f32.mrb[0].mxu0
        %v2350 = vadd.f32 %v2125, %v2349
        %v2351 = vpop.f32.mrb[0].mxu0
        %2352 = vdwg.mxu0
        %2353 = vst [vmem:[%s218] sm:$0xff] %v2195
        %2354 = vst [vmem:[%s218 + $0x8] sm:$0xff] %v2200
        %2355 = vst [vmem:[%s218 + $0x10] sm:$0xff] %v2205
        %2356 = vst [vmem:[%s218 + $0x18] sm:$0xff] %v2210
        %2357 = vst [vmem:[%s218 + $0x20] sm:$0xff] %v2215
        %2358 = vst [vmem:[%s218 + $0x28] sm:$0xff] %v2220
        %2359 = vst [vmem:[%s218 + $0x30] sm:$0xff] %v2225
        %2360 = vst [vmem:[%s218 + $0x38] sm:$0xff] %v2230
        %2361 = vst [vmem:[%s218 + $0x40] sm:$0xff] %v2235
        %2362 = vst [vmem:[%s218 + $0x48] sm:$0xff] %v2240
        %2363 = vst [vmem:[%s218 + $0x50] sm:$0xff] %v2245
        %2364 = vst [vmem:[%s218 + $0x58] sm:$0xff] %v2250
        %2365 = vst [vmem:[%s218 + $0x60] sm:$0xff] %v2255
        %2366 = vst [vmem:[%s218 + $0x68] sm:$0xff] %v2260
        %2367 = vst [vmem:[%s218 + $0x70] sm:$0xff] %v2265
        %2368 = vst [vmem:[%s218 + $0x78] sm:$0xff] %v2270
        %2369 = vst [vmem:[%s218 + $0x80] sm:$0xff] %v2275
        %2370 = vst [vmem:[%s218 + $0x88] sm:$0xff] %v2280
        %2371 = vst [vmem:[%s218 + $0x90] sm:$0xff] %v2285
        %2372 = vst [vmem:[%s218 + $0x98] sm:$0xff] %v2290
        %2373 = vst [vmem:[%s218 + $0xa0] sm:$0xff] %v2295
        %2374 = vst [vmem:[%s218 + $0xa8] sm:$0xff] %v2300
        %2375 = vst [vmem:[%s218 + $0xb0] sm:$0xff] %v2305
        %2376 = vst [vmem:[%s218 + $0xb8] sm:$0xff] %v2310
        %2377 = vst [vmem:[%s218 + $0xc0] sm:$0xff] %v2315
        %2378 = vst [vmem:[%s218 + $0xc8] sm:$0xff] %v2320
        %2379 = vst [vmem:[%s218 + $0xd0] sm:$0xff] %v2325
        %2380 = vst [vmem:[%s218 + $0xd8] sm:$0xff] %v2330
        %2381 = vst [vmem:[%s218 + $0xe0] sm:$0xff] %v2335
        %2382 = vst [vmem:[%s218 + $0xe8] sm:$0xff] %v2340
        %2383 = vst [vmem:[%s218 + $0xf0] sm:$0xff] %v2345
        %2384 = vst [vmem:[%s218 + $0xf8] sm:$0xff] %v2350
      $region44: #{gcn_forward.1} parent=35 // pred_fallthru
        _
      %s2385 = smul.u32 %s20, %s19
      %s2386 = smul.u32 32, %s2385
      %p2387 = scmp.lt.s32.totalorder %s2386, 63
      %s2388 = scalar_select %p2387, %s2386, 63
      %s2389 = smul.addr %s2388, 8
      %s2390 = scalar_lea.vmem %s4, %s2389
      // Predicated region
      $region49: #{gcn_forward.1} parent=35 // pred_check
        %p2391 = pneg %p136
      $region50: #{gcn_forward.1} parent=35 // pred_check_branch
        %2393 = sbr.rel (%p2391) target = $region52
      $region51: #{gcn_forward.1} parent=35 // pred_region
        %s2394 = smul.u32 %s20, %s19
        %s2395 = smul.u32 32, %s2394
      $region52: #{gcn_forward.1} parent=35 // pred_fallthru
        _
    $region36: #{gcn_forward.1} parent=5 // pred_fallthru
      _
    %p2396 = scmp.le.s32.totalorder 2, %s10
    // Predicated region
    $region53: #{gcn_forward.1} parent=5 // pred_check
      %p2397 = pneg %p2396
    $region54: #{gcn_forward.1} parent=5 // pred_check_branch
      %2399 = sbr.rel (%p2397) target = $region56
    $region55: #{gcn_forward.1} parent=5 // pred_region
      %s2400 = ssub.s32 %s10, 2
      // Predicated region
      $region57: #{gcn_forward.1} parent=55 // pred_check
        %p2401 = pneg %p142
      $region58: #{gcn_forward.1} parent=55 // pred_check_branch
        %2403 = sbr.rel (%p2401) target = $region60
      $region59: #{gcn_forward.1} parent=55 // pred_region
        %s2404 = smul.u32 %s22, %s21
        %s2405 = smul.u32 32, %s2404
        %p2406 = scmp.lt.s32.totalorder %s2405, 63
        %s2407 = scalar_select %p2406, %s2405, 63
        %s2408 = smul.addr %s2407, 8
        %s2409 = scalar_lea.vmem %s4, %s2408
      $region60: #{gcn_forward.1} parent=55 // pred_fallthru
        _
    $region56: #{gcn_forward.1} parent=5 // pred_fallthru
      _
  $region6: #{gcn_forward.1} parent=0 // loop_footer
    %s14 = sadd.s32 1, %s10
  $region7: #{gcn_forward.1} parent=0 // loop_footer_branch
    %9 = sbr.rel target = $region3
  $region8: #{gcn_forward.1} parent=0 // loop_exit
    _

</llo_original>
